<compile_context>
chip_gen: v5e
topology: v5e:2x2
jax: 0.10.0
libtpu: 0.0.40
codegen_flags: <defaults>
</compile_context>

<pallas_src>
import jax
import jax.numpy as jnp
import numpy as np
from jax.experimental import pallas as pl
from jax.experimental.pallas import tpu as pltpu


# --------------------------------------------------------------------------
# Kernels
# --------------------------------------------------------------------------

def _bottleneck_body(x_ref, w1_ref, s1_ref, b1_ref,
                     w2_ref, s2_ref, b2_ref,
                     w3_ref, s3_ref, b3_ref,
                     out_ref, shortcut_fn):
    """x_ref: full (H, W, Cin) bf16 image for the current batch element.
    out_ref: (tile_h, W, Cout) slab for H-tile pl.program_id(1)."""
    H, W, Cin = x_ref.shape
    TH = out_ref.shape[0]
    P = w1_ref.shape[1]
    Cout = w3_ref.shape[1]

    t = pl.program_id(1)
    nt = pl.num_programs(1)
    r0 = pl.multiple_of(t * TH, TH)

    # Center rows of the tile (bf16 straight from HBM; no padded copy).
    x_c = x_ref[pl.ds(r0, TH), :, :]                          # (TH, W, Cin)
    # One-row halos, clamped into the image; zeroed after bn1 when out of image.
    x_t = x_ref[pl.ds(jnp.maximum(r0 - 1, 0), 1), :, :]       # (1, W, Cin)
    x_b = x_ref[pl.ds(jnp.minimum(r0 + TH, H - 1), 1), :, :]  # (1, W, Cin)

    # ---- conv1 (1x1) + bn1 + relu (bf16 MXU, f32 accumulate) ----------------
    def conv1(xrows, m):
        h = jnp.dot(xrows.reshape(m, Cin), w1_ref[...],
                    preferred_element_type=jnp.float32)
        return jnp.maximum(h * s1_ref[...] + b1_ref[...], 0.0)

    h1_c = conv1(x_c, TH * W)                                 # (TH*W, P) f32
    # Halo rows are a cheap (W x Cin) recompute. Rows outside the image must
    # act as conv2's zero padding (relu(b1) != 0), so zero them there. These
    # are tiny (W, P) selects -- interior tiles pay nothing slab-wide.
    h1_t = jnp.where(t > 0, conv1(x_t, W), 0.0)               # (W, P)
    h1_b = jnp.where(t < nt - 1, conv1(x_b, W), 0.0)          # (W, P)

    bf = jnp.bfloat16
    h1 = jnp.concatenate([h1_t.reshape(1, W, P),
                          h1_c.reshape(TH, W, P),
                          h1_b.reshape(1, W, P)], axis=0).astype(bf)  # (TH+2,W,P)

    # ---- conv2 (3x3, SAME) + bn2 + relu: 3 matmuls of K = 3*P ---------------
    # Column taps (dj = -1, 0, +1) concatenated on the lane axis so each row
    # tap is one contiguous (TH*W, 3P) x (3P, P) MXU matmul.
    zcol = jnp.zeros((TH + 2, 1, P), bf)
    left = jnp.concatenate([zcol, h1[:, :W - 1, :]], axis=1)   # dj = -1
    right = jnp.concatenate([h1[:, 1:, :], zcol], axis=1)      # dj = +1
    slab = jnp.concatenate([left, h1, right], axis=-1)         # (TH+2, W, 3P)

    acc = jnp.dot(slab[0:TH].reshape(TH * W, 3 * P), w2_ref[0],
                  preferred_element_type=jnp.float32)
    for di in (1, 2):                                          # static unroll
        acc = acc + jnp.dot(slab[di:di + TH].reshape(TH * W, 3 * P), w2_ref[di],
                            preferred_element_type=jnp.float32)
    h2 = jnp.maximum(acc * s2_ref[...] + b2_ref[...], 0.0).astype(bf)

    # ---- conv3 (1x1) + bn3 + shortcut (f32) + relu ---------------------------
    h3 = jnp.dot(h2, w3_ref[...], preferred_element_type=jnp.float32)
    h3 = h3 * s3_ref[...] + b3_ref[...]
    h3 = h3 + shortcut_fn(x_c)

    out_ref[...] = jnp.maximum(h3, 0.0).reshape(TH, W, Cout).astype(out_ref.dtype)


def _bottleneck_kernel_identity(x_ref, w1_ref, s1_ref, b1_ref,
                                w2_ref, s2_ref, b2_ref,
                                w3_ref, s3_ref, b3_ref, out_ref):
    TH, W, _ = out_ref.shape
    Cin = x_ref.shape[-1]

    def shortcut(x_c):
        # Identity shortcut: bf16 residual rows, added in f32 (no matmul).
        return x_c.reshape(TH * W, Cin).astype(jnp.float32)

    _bottleneck_body(x_ref, w1_ref, s1_ref, b1_ref, w2_ref, s2_ref, b2_ref,
                     w3_ref, s3_ref, b3_ref, out_ref, shortcut)


def _bottleneck_kernel_proj(x_ref, w1_ref, s1_ref, b1_ref,
                            w2_ref, s2_ref, b2_ref,
                            w3_ref, s3_ref, b3_ref,
                            wd_ref, sd_ref, bd_ref, out_ref):
    TH, W, _ = out_ref.shape
    Cin = x_ref.shape[-1]

    def shortcut(x_c):
        ds = jnp.dot(x_c.reshape(TH * W, Cin), wd_ref[...],
                     preferred_element_type=jnp.float32)
        return ds * sd_ref[...] + bd_ref[...]

    _bottleneck_body(x_ref, w1_ref, s1_ref, b1_ref, w2_ref, s2_ref, b2_ref,
                     w3_ref, s3_ref, b3_ref, out_ref, shortcut)


# --------------------------------------------------------------------------
# Wrappers
# --------------------------------------------------------------------------

def _full_spec(shape):
    nd = len(shape)
    return pl.BlockSpec(shape, lambda n, t, _nd=nd: (0,) * _nd)


def _pick_tile_h(H, W, Cin, P, Cout, out_isz):
    # Rough live bytes per output row of the in-kernel intermediates.
    per_row = W * (Cin * 2 + P * 6 + 3 * P * 4 + P * 6 + Cout * (4 + out_isz))
    budget = 8 << 20                       # conservative activation budget (fits v7x)
    cap = max(1, budget // max(per_row, 1))
    fits = [d for d in range(1, H + 1) if H % d == 0 and d <= cap]
    # Largest fitting divisor: amortizes halo recompute / per-step overhead and
    # keeps the matmul M dim (tile_h * W) large enough to fill the MXU.
    return max(fits) if fits else 1
    # TODO(synk): for H with no good divisor, pad H or use a masked last tile
    # instead of degrading to tile_h == 1.


def _vmem_limit_bytes(H, W, Cin, P, Cout, tile_h, out_isz, weight_bytes):
    x_block = H * W * Cin * 2 * 2                       # bf16 input block, 2 buffers
    out_block = tile_h * W * Cout * out_isz * 2         # output block, 2 buffers
    rows = tile_h + 2
    interm = (rows * W * (Cin * 2 + P * 6 + 3 * P * 2)
              + tile_h * W * (P * 6 + Cout * 8))
    need = x_block + out_block + 2 * weight_bytes + 2 * interm
    return int(min(64 << 20, max(32 << 20, 2 * need)))  # <= 64 MiB so v7x still fits


def bottleneck_forward_nhwc(x_nhwc, params, *, stride=1, tile_h=None,
                            out_dtype=jnp.float32):
    """x_nhwc: (N, H, W, Cin) -> (N, H, W, Cout) out_dtype.
    Use out_dtype=jnp.bfloat16 when the consumer is the next bf16 block."""
    assert stride == 1, "TODO(synk): only stride=1 is implemented"
    (w1, s1, b1, w2, s2, b2, w3, s3, b3, wd, sd, bd) = params
    N, H, W, Cin = x_nhwc.shape
    P = w1.shape[1]
    Cout = w3.shape[1]
    identity = wd is None
    if identity:
        assert Cin == Cout, "identity shortcut requires Cin == Cout"

    out_isz = jnp.dtype(out_dtype).itemsize
    if tile_h is None:
        tile_h = _pick_tile_h(H, W, Cin, P, Cout, out_isz)
    assert H % tile_h == 0
    n_tiles = H // tile_h

    bf = jnp.bfloat16
    x_bf = x_nhwc.astype(bf)                   # bf16 I/O: halves HBM<->VMEM traffic
    w1b = w1.astype(bf)
    w2b = w2.reshape(3, 3 * P, P).astype(bf)   # (di, dj*Cin, Cout): K = 3P taps
    w3b = w3.astype(bf)

    in_specs = [
        pl.BlockSpec((None, H, W, Cin), lambda n, t: (n, 0, 0, 0)),      # x (bf16)
        _full_spec((Cin, P)), _full_spec((1, P)), _full_spec((1, P)),    # conv1/bn1
        _full_spec((3, 3 * P, P)), _full_spec((1, P)), _full_spec((1, P)),  # conv2/bn2
        _full_spec((P, Cout)), _full_spec((1, Cout)), _full_spec((1, Cout)),  # conv3/bn3
    ]
    args = [x_bf, w1b, s1, b1, w2b, s2, b2, w3b, s3, b3]
    kernel = _bottleneck_kernel_identity

    weight_bytes = ((w1b.size + w2b.size + w3b.size) * 2
                    + (s1.size + b1.size + s2.size + b2.size + s3.size + b3.size) * 4)
    flops = 2 * N * H * W * (Cin * P + 9 * P * P + P * Cout)
    if not identity:
        in_specs += [_full_spec((Cin, Cout)), _full_spec((1, Cout)),
                     _full_spec((1, Cout))]
        args += [wd.astype(bf), sd, bd]
        kernel = _bottleneck_kernel_proj
        weight_bytes += wd.size * 2 + (sd.size + bd.size) * 4
        flops += 2 * N * H * W * Cin * Cout

    cost = pl.CostEstimate(
        flops=int(flops), transcendentals=0,
        bytes_accessed=int(N * H * W * Cin * 2 + N * H * W * Cout * out_isz
                           + int(weight_bytes)))

    grid_spec = pltpu.PrefetchScalarGridSpec(
        num_scalar_prefetch=0,
        grid=(N, n_tiles),
        in_specs=in_specs,
        out_specs=pl.BlockSpec((None, tile_h, W, Cout),
                               lambda n, t: (n, t, 0, 0)),
    )

    return pl.pallas_call(
        kernel,
        out_shape=jax.ShapeDtypeStruct((N, H, W, Cout), out_dtype),
        grid_spec=grid_spec,
        cost_estimate=cost,
        compiler_params=pltpu.CompilerParams(
            dimension_semantics=("parallel", "parallel"),
            vmem_limit_bytes=_vmem_limit_bytes(H, W, Cin, P, Cout, tile_h,
                                               out_isz, int(weight_bytes))),
    )(*args)


def bottleneck_forward(x_nchw, params, *, stride=1, tile_h=None,
                       out_dtype=jnp.float32):
    """PyTorch-layout interop wrapper. In a full network keep activations NHWC
    (and bf16) end-to-end and call bottleneck_forward_nhwc directly."""
    x = jnp.transpose(x_nchw, (0, 2, 3, 1))
    out = bottleneck_forward_nhwc(x, params, stride=stride, tile_h=tile_h,
                                  out_dtype=out_dtype)
    return jnp.transpose(out, (0, 3, 1, 2))


# --------------------------------------------------------------------------
# Parameter setup (deterministic, synthetic) + BN folding
# --------------------------------------------------------------------------

def _bn_fold(gamma, beta, mean, var, eps=1e-5):
    scale = gamma / jnp.sqrt(var + eps)
    bias = beta - mean * scale
    return (scale.reshape(1, -1).astype(jnp.float32),
            bias.reshape(1, -1).astype(jnp.float32))


def init_params(key, in_planes, planes, out_planes=0, stride=1):
    expansion = 4
    out_planes = expansion * planes if out_planes == 0 else out_planes
    ks = jax.random.split(key, 8)

    def conv_w(k, cin, cout):
        return 0.1 * jax.random.normal(k, (cin, cout), jnp.float32)

    def bn_params(k, c):
        k1, k2, k3, k4 = jax.random.split(k, 4)
        gamma = 1.0 + 0.1 * jax.random.normal(k1, (c,), jnp.float32)
        beta = 0.1 * jax.random.normal(k2, (c,), jnp.float32)
        mean = 0.1 * jax.random.normal(k3, (c,), jnp.float32)
        var = 0.5 + 0.5 * jnp.abs(jax.random.normal(k4, (c,), jnp.float32))
        return _bn_fold(gamma, beta, mean, var)

    w1 = conv_w(ks[0], in_planes, planes)
    s1, b1 = bn_params(ks[1], planes)
    w2 = 0.1 * jax.random.normal(ks[2], (3, 3, planes, planes), jnp.float32)  # HWIO
    s2, b2 = bn_params(ks[3], planes)
    w3 = conv_w(ks[4], planes, out_planes)
    s3, b3 = bn_params(ks[5], out_planes)
    if stride != 1 or in_planes != out_planes:
        wd = conv_w(ks[6], in_planes, out_planes)
        sd, bd = bn_params(ks[7], out_planes)
    else:
        wd = sd = bd = None            # identity shortcut -> specialized kernel
    return (w1, s1, b1, w2, s2, b2, w3, s3, b3, wd, sd, bd)


# --------------------------------------------------------------------------
# Pure-JAX reference (mirrors the kernel's bf16-matmul / f32-accumulate numerics)
# --------------------------------------------------------------------------

def bottleneck_ref_nhwc(x, params):
    (w1, s1, b1, w2, s2, b2, w3, s3, b3, wd, sd, bd) = params
    bf, f32 = jnp.bfloat16, jnp.float32
    xb = x.astype(bf)                      # kernel reads x as bf16 from HBM
    h = jnp.einsum('nhwc,cp->nhwp', xb, w1.astype(bf),
                   preferred_element_type=f32)
    h = jax.nn.relu(h * s1 + b1).astype(bf)
    h = jax.lax.conv_general_dilated(
        h, w2.astype(bf), window_strides=(1, 1), padding='SAME',
        dimension_numbers=('NHWC', 'HWIO', 'NHWC'),
        preferred_element_type=f32)
    h = jax.nn.relu(h * s2 + b2).astype(bf)
    h = jnp.einsum('nhwp,pq->nhwq', h, w3.astype(bf),
                   preferred_element_type=f32) * s3 + b3
    if wd is None:
        d = xb.astype(f32)                 # bf16-rounded residual, f32 add
    else:
        d = jnp.einsum('nhwc,cq->nhwq', xb, wd.astype(bf),
                       preferred_element_type=f32) * sd + bd
    return jax.nn.relu(h + d)


def bottleneck_ref(x_nchw, params):
    x = jnp.transpose(x_nchw, (0, 2, 3, 1)).astype(jnp.float32)
    return jnp.transpose(bottleneck_ref_nhwc(x, params), (0, 3, 1, 2))


# --------------------------------------------------------------------------
# Test
# --------------------------------------------------------------------------

if __name__ == "__main__":
    key = jax.random.PRNGKey(0)
    kx1, kp1, kx2, kp2 = jax.random.split(key, 4)
    N, H, W = 2, 16, 16
    TOL = dict(atol=2e-3, rtol=2e-3)

    # Case 1: projection downsample (in_planes != out_planes). NCHW like PyTorch.
    in_planes, planes = 8, 4                      # out_planes = 16
    x1 = jax.random.normal(kx1, (N, in_planes, H, W), jnp.float32)
    p1 = init_params(kp1, in_planes, planes)
    out1 = jax.block_until_ready(bottleneck_forward(x1, p1, tile_h=8))
    np.testing.assert_allclose(np.asarray(out1), np.asarray(bottleneck_ref(x1, p1)),
                               **TOL)

    # Case 2: identity shortcut (in_planes == out_planes), with interior H-tiles.
    in_planes2, planes2 = 16, 4                   # out_planes = 16 == in_planes
    x2 = jax.random.normal(kx2, (N, in_planes2, H, W), jnp.float32)
    p2 = init_params(kp2, in_planes2, planes2)
    out2 = jax.block_until_ready(bottleneck_forward(x2, p2, tile_h=4))
    np.testing.assert_allclose(np.asarray(out2), np.asarray(bottleneck_ref(x2, p2)),
                               **TOL)

    print("KERNEL_OK")
</pallas_src>

<mosaic_0001>
module attributes {stable_mosaic.version = 11 : i64} {
  func.func @_bottleneck_kernel_proj(%arg0: i32, %arg1: i32, %arg2: memref<1x16x16x8xbf16, #tpu.memory_space<vmem>>, %arg3: memref<8x4xbf16, #tpu.memory_space<vmem>>, %arg4: memref<1x4xf32, #tpu.memory_space<vmem>>, %arg5: memref<1x4xf32, #tpu.memory_space<vmem>>, %arg6: memref<3x12x4xbf16, #tpu.memory_space<vmem>>, %arg7: memref<1x4xf32, #tpu.memory_space<vmem>>, %arg8: memref<1x4xf32, #tpu.memory_space<vmem>>, %arg9: memref<4x16xbf16, #tpu.memory_space<vmem>>, %arg10: memref<1x16xf32, #tpu.memory_space<vmem>>, %arg11: memref<1x16xf32, #tpu.memory_space<vmem>>, %arg12: memref<8x16xbf16, #tpu.memory_space<vmem>>, %arg13: memref<1x16xf32, #tpu.memory_space<vmem>>, %arg14: memref<1x16xf32, #tpu.memory_space<vmem>>, %arg15: memref<1x8x16x16xf32, #tpu.memory_space<vmem>>) attributes {dimension_semantics = [#tpu.dimension_semantics<parallel>, #tpu.dimension_semantics<parallel>], iteration_bounds = array<i64: 2, 2>, scalar_prefetch = 0 : i64, scratch_operands = 0 : i64, tpu.core_type = #tpu.core_type<tc>, window_params = [{transform_indices = @transform_0, window_bounds = array<i64: 1, 16, 16, 8>}, {pipeline_mode = #tpu.pipeline_mode<synchronous>, transform_indices = @transform_1, window_bounds = array<i64: 8, 4>}, {pipeline_mode = #tpu.pipeline_mode<synchronous>, transform_indices = @transform_2, window_bounds = array<i64: 1, 4>}, {pipeline_mode = #tpu.pipeline_mode<synchronous>, transform_indices = @transform_3, window_bounds = array<i64: 1, 4>}, {pipeline_mode = #tpu.pipeline_mode<synchronous>, transform_indices = @transform_4, window_bounds = array<i64: 3, 12, 4>}, {pipeline_mode = #tpu.pipeline_mode<synchronous>, transform_indices = @transform_5, window_bounds = array<i64: 1, 4>}, {pipeline_mode = #tpu.pipeline_mode<synchronous>, transform_indices = @transform_6, window_bounds = array<i64: 1, 4>}, {pipeline_mode = #tpu.pipeline_mode<synchronous>, transform_indices = @transform_7, window_bounds = array<i64: 4, 16>}, {pipeline_mode = #tpu.pipeline_mode<synchronous>, transform_indices = @transform_8, window_bounds = array<i64: 1, 16>}, {pipeline_mode = #tpu.pipeline_mode<synchronous>, transform_indices = @transform_9, window_bounds = array<i64: 1, 16>}, {pipeline_mode = #tpu.pipeline_mode<synchronous>, transform_indices = @transform_10, window_bounds = array<i64: 8, 16>}, {pipeline_mode = #tpu.pipeline_mode<synchronous>, transform_indices = @transform_11, window_bounds = array<i64: 1, 16>}, {pipeline_mode = #tpu.pipeline_mode<synchronous>, transform_indices = @transform_12, window_bounds = array<i64: 1, 16>}, {transform_indices = @transform_13, window_bounds = array<i64: 1, 8, 16, 16>}]} {
    %c8_i32 = arith.constant 8 : i32
    %0 = arith.muli %arg1, %c8_i32 : i32
    %1 = tpu.assume_multiple %0, 8 : i32
    %c0 = arith.constant 0 : index
    %2 = arith.index_cast %1 : i32 to index
    %c0_0 = arith.constant 0 : index
    %c0_1 = arith.constant 0 : index
    %3 = vector.load %arg2[%c0, %2, %c0_0, %c0_1] : memref<1x16x16x8xbf16, #tpu.memory_space<vmem>>, vector<1x8x16x8xbf16>
    %4 = vector.shape_cast %3 : vector<1x8x16x8xbf16> to vector<8x16x8xbf16>
    %c1_i32 = arith.constant 1 : i32
    %5 = arith.subi %1, %c1_i32 : i32
    %c0_i32 = arith.constant 0 : i32
    %6 = arith.maxsi %5, %c0_i32 : i32
    %c0_2 = arith.constant 0 : index
    %7 = arith.index_cast %6 : i32 to index
    %c0_3 = arith.constant 0 : index
    %c0_4 = arith.constant 0 : index
    %8 = vector.load %arg2[%c0_2, %7, %c0_3, %c0_4] : memref<1x16x16x8xbf16, #tpu.memory_space<vmem>>, vector<1x1x16x8xbf16>
    %9 = vector.shape_cast %8 : vector<1x1x16x8xbf16> to vector<1x16x8xbf16>
    %c8_i32_5 = arith.constant 8 : i32
    %10 = arith.addi %1, %c8_i32_5 : i32
    %c15_i32 = arith.constant 15 : i32
    %11 = arith.minsi %10, %c15_i32 : i32
    %c0_6 = arith.constant 0 : index
    %12 = arith.index_cast %11 : i32 to index
    %c0_7 = arith.constant 0 : index
    %c0_8 = arith.constant 0 : index
    %13 = vector.load %arg2[%c0_6, %12, %c0_7, %c0_8] : memref<1x16x16x8xbf16, #tpu.memory_space<vmem>>, vector<1x1x16x8xbf16>
    %14 = vector.shape_cast %13 : vector<1x1x16x8xbf16> to vector<1x16x8xbf16>
    %15 = vector.shape_cast %4 : vector<8x16x8xbf16> to vector<128x8xbf16>
    %c0_9 = arith.constant 0 : index
    %c0_10 = arith.constant 0 : index
    %16 = vector.load %arg3[%c0_9, %c0_10] : memref<8x4xbf16, #tpu.memory_space<vmem>>, vector<8x4xbf16>
    %cst = arith.constant dense<0.000000e+00> : vector<128x4xf32>
    %17 = tpu.matmul %15, %16, %cst {dimension_numbers = #tpu.dot_dimension_numbers<[1], [0], [0], [1], [0, 0, 1, 1], [], []>} : vector<128x8xbf16>, vector<8x4xbf16>, vector<128x4xf32> -> vector<128x4xf32>
    %c0_11 = arith.constant 0 : index
    %c0_12 = arith.constant 0 : index
    %18 = vector.load %arg4[%c0_11, %c0_12] : memref<1x4xf32, #tpu.memory_space<vmem>>, vector<1x4xf32>
    %19 = vector.broadcast %18 : vector<1x4xf32> to vector<128x4xf32>
    %20 = arith.mulf %17, %19 : vector<128x4xf32>
    %c0_13 = arith.constant 0 : index
    %c0_14 = arith.constant 0 : index
    %21 = vector.load %arg5[%c0_13, %c0_14] : memref<1x4xf32, #tpu.memory_space<vmem>>, vector<1x4xf32>
    %22 = vector.broadcast %21 : vector<1x4xf32> to vector<128x4xf32>
    %23 = arith.addf %20, %22 : vector<128x4xf32>
    %cst_15 = arith.constant 0.000000e+00 : f32
    %24 = vector.broadcast %cst_15 : f32 to vector<128x4xf32>
    %25 = arith.maximumf %23, %24 : vector<128x4xf32>
    %c0_i32_16 = arith.constant 0 : i32
    %26 = arith.cmpi sgt, %arg1, %c0_i32_16 : i32
    %27 = vector.shape_cast %9 : vector<1x16x8xbf16> to vector<16x8xbf16>
    %c0_17 = arith.constant 0 : index
    %c0_18 = arith.constant 0 : index
    %28 = vector.load %arg3[%c0_17, %c0_18] : memref<8x4xbf16, #tpu.memory_space<vmem>>, vector<8x4xbf16>
    %cst_19 = arith.constant dense<0.000000e+00> : vector<16x4xf32>
    %29 = tpu.matmul %27, %28, %cst_19 {dimension_numbers = #tpu.dot_dimension_numbers<[1], [0], [0], [1], [0, 0, 1, 1], [], []>} : vector<16x8xbf16>, vector<8x4xbf16>, vector<16x4xf32> -> vector<16x4xf32>
    %c0_20 = arith.constant 0 : index
    %c0_21 = arith.constant 0 : index
    %30 = vector.load %arg4[%c0_20, %c0_21] : memref<1x4xf32, #tpu.memory_space<vmem>>, vector<1x4xf32>
    %31 = vector.broadcast %30 : vector<1x4xf32> to vector<16x4xf32>
    %32 = arith.mulf %29, %31 : vector<16x4xf32>
    %c0_22 = arith.constant 0 : index
    %c0_23 = arith.constant 0 : index
    %33 = vector.load %arg5[%c0_22, %c0_23] : memref<1x4xf32, #tpu.memory_space<vmem>>, vector<1x4xf32>
    %34 = vector.broadcast %33 : vector<1x4xf32> to vector<16x4xf32>
    %35 = arith.addf %32, %34 : vector<16x4xf32>
    %cst_24 = arith.constant 0.000000e+00 : f32
    %36 = vector.broadcast %cst_24 : f32 to vector<16x4xf32>
    %37 = arith.maximumf %35, %36 : vector<16x4xf32>
    %cst_25 = arith.constant 0.000000e+00 : f32
    %38 = vector.broadcast %cst_25 : f32 to vector<16x4xf32>
    %39 = arith.select %26, %37, %38 : vector<16x4xf32>
    %c1_i32_26 = arith.constant 1 : i32
    %40 = arith.cmpi slt, %arg1, %c1_i32_26 : i32
    %41 = vector.shape_cast %14 : vector<1x16x8xbf16> to vector<16x8xbf16>
    %c0_27 = arith.constant 0 : index
    %c0_28 = arith.constant 0 : index
    %42 = vector.load %arg3[%c0_27, %c0_28] : memref<8x4xbf16, #tpu.memory_space<vmem>>, vector<8x4xbf16>
    %cst_29 = arith.constant dense<0.000000e+00> : vector<16x4xf32>
    %43 = tpu.matmul %41, %42, %cst_29 {dimension_numbers = #tpu.dot_dimension_numbers<[1], [0], [0], [1], [0, 0, 1, 1], [], []>} : vector<16x8xbf16>, vector<8x4xbf16>, vector<16x4xf32> -> vector<16x4xf32>
    %c0_30 = arith.constant 0 : index
    %c0_31 = arith.constant 0 : index
    %44 = vector.load %arg4[%c0_30, %c0_31] : memref<1x4xf32, #tpu.memory_space<vmem>>, vector<1x4xf32>
    %45 = vector.broadcast %44 : vector<1x4xf32> to vector<16x4xf32>
    %46 = arith.mulf %43, %45 : vector<16x4xf32>
    %c0_32 = arith.constant 0 : index
    %c0_33 = arith.constant 0 : index
    %47 = vector.load %arg5[%c0_32, %c0_33] : memref<1x4xf32, #tpu.memory_space<vmem>>, vector<1x4xf32>
    %48 = vector.broadcast %47 : vector<1x4xf32> to vector<16x4xf32>
    %49 = arith.addf %46, %48 : vector<16x4xf32>
    %cst_34 = arith.constant 0.000000e+00 : f32
    %50 = vector.broadcast %cst_34 : f32 to vector<16x4xf32>
    %51 = arith.maximumf %49, %50 : vector<16x4xf32>
    %cst_35 = arith.constant 0.000000e+00 : f32
    %52 = vector.broadcast %cst_35 : f32 to vector<16x4xf32>
    %53 = arith.select %40, %51, %52 : vector<16x4xf32>
    %54 = vector.shape_cast %39 : vector<16x4xf32> to vector<1x16x4xf32>
    %55 = vector.shape_cast %25 : vector<128x4xf32> to vector<8x16x4xf32>
    %56 = vector.shape_cast %53 : vector<16x4xf32> to vector<1x16x4xf32>
    %57 = tpu.concatenate %54, %55, %56 in 0 : vector<1x16x4xf32>, vector<8x16x4xf32>, vector<1x16x4xf32> -> vector<10x16x4xf32>
    %58 = arith.truncf %57 : vector<10x16x4xf32> to vector<10x16x4xbf16>
    %cst_36 = arith.constant 0.000000e+00 : bf16
    %59 = vector.broadcast %cst_36 : bf16 to vector<10x1x4xbf16>
    %60 = vector.extract_strided_slice %58 {offsets = [0, 0, 0], sizes = [10, 15, 4], strides = [1, 1, 1]} : vector<10x16x4xbf16> to vector<10x15x4xbf16>
    %61 = tpu.concatenate %59, %60 in 1 : vector<10x1x4xbf16>, vector<10x15x4xbf16> -> vector<10x16x4xbf16>
    %62 = vector.extract_strided_slice %58 {offsets = [0, 1, 0], sizes = [10, 15, 4], strides = [1, 1, 1]} : vector<10x16x4xbf16> to vector<10x15x4xbf16>
    %63 = tpu.concatenate %62, %59 in 1 : vector<10x15x4xbf16>, vector<10x1x4xbf16> -> vector<10x16x4xbf16>
    %64 = tpu.concatenate %61, %58, %63 in 2 : vector<10x16x4xbf16>, vector<10x16x4xbf16>, vector<10x16x4xbf16> -> vector<10x16x12xbf16>
    %65 = vector.extract_strided_slice %64 {offsets = [0, 0, 0], sizes = [8, 16, 12], strides = [1, 1, 1]} : vector<10x16x12xbf16> to vector<8x16x12xbf16>
    %66 = vector.shape_cast %65 : vector<8x16x12xbf16> to vector<128x12xbf16>
    %c0_37 = arith.constant 0 : index
    %c0_38 = arith.constant 0 : index
    %c0_39 = arith.constant 0 : index
    %67 = vector.load %arg6[%c0_37, %c0_38, %c0_39] : memref<3x12x4xbf16, #tpu.memory_space<vmem>>, vector<1x12x4xbf16>
    %68 = vector.shape_cast %67 : vector<1x12x4xbf16> to vector<12x4xbf16>
    %cst_40 = arith.constant dense<0.000000e+00> : vector<128x4xf32>
    %69 = tpu.matmul %66, %68, %cst_40 {dimension_numbers = #tpu.dot_dimension_numbers<[1], [0], [0], [1], [0, 0, 1, 1], [], []>} : vector<128x12xbf16>, vector<12x4xbf16>, vector<128x4xf32> -> vector<128x4xf32>
    %70 = vector.extract_strided_slice %64 {offsets = [1, 0, 0], sizes = [8, 16, 12], strides = [1, 1, 1]} : vector<10x16x12xbf16> to vector<8x16x12xbf16>
    %71 = vector.shape_cast %70 : vector<8x16x12xbf16> to vector<128x12xbf16>
    %c1 = arith.constant 1 : index
    %c0_41 = arith.constant 0 : index
    %c0_42 = arith.constant 0 : index
    %72 = vector.load %arg6[%c1, %c0_41, %c0_42] : memref<3x12x4xbf16, #tpu.memory_space<vmem>>, vector<1x12x4xbf16>
    %73 = vector.shape_cast %72 : vector<1x12x4xbf16> to vector<12x4xbf16>
    %cst_43 = arith.constant dense<0.000000e+00> : vector<128x4xf32>
    %74 = tpu.matmul %71, %73, %cst_43 {dimension_numbers = #tpu.dot_dimension_numbers<[1], [0], [0], [1], [0, 0, 1, 1], [], []>} : vector<128x12xbf16>, vector<12x4xbf16>, vector<128x4xf32> -> vector<128x4xf32>
    %75 = arith.addf %69, %74 : vector<128x4xf32>
    %76 = vector.extract_strided_slice %64 {offsets = [2, 0, 0], sizes = [8, 16, 12], strides = [1, 1, 1]} : vector<10x16x12xbf16> to vector<8x16x12xbf16>
    %77 = vector.shape_cast %76 : vector<8x16x12xbf16> to vector<128x12xbf16>
    %c2 = arith.constant 2 : index
    %c0_44 = arith.constant 0 : index
    %c0_45 = arith.constant 0 : index
    %78 = vector.load %arg6[%c2, %c0_44, %c0_45] : memref<3x12x4xbf16, #tpu.memory_space<vmem>>, vector<1x12x4xbf16>
    %79 = vector.shape_cast %78 : vector<1x12x4xbf16> to vector<12x4xbf16>
    %cst_46 = arith.constant dense<0.000000e+00> : vector<128x4xf32>
    %80 = tpu.matmul %77, %79, %cst_46 {dimension_numbers = #tpu.dot_dimension_numbers<[1], [0], [0], [1], [0, 0, 1, 1], [], []>} : vector<128x12xbf16>, vector<12x4xbf16>, vector<128x4xf32> -> vector<128x4xf32>
    %81 = arith.addf %75, %80 : vector<128x4xf32>
    %c0_47 = arith.constant 0 : index
    %c0_48 = arith.constant 0 : index
    %82 = vector.load %arg7[%c0_47, %c0_48] : memref<1x4xf32, #tpu.memory_space<vmem>>, vector<1x4xf32>
    %83 = vector.broadcast %82 : vector<1x4xf32> to vector<128x4xf32>
    %84 = arith.mulf %81, %83 : vector<128x4xf32>
    %c0_49 = arith.constant 0 : index
    %c0_50 = arith.constant 0 : index
    %85 = vector.load %arg8[%c0_49, %c0_50] : memref<1x4xf32, #tpu.memory_space<vmem>>, vector<1x4xf32>
    %86 = vector.broadcast %85 : vector<1x4xf32> to vector<128x4xf32>
    %87 = arith.addf %84, %86 : vector<128x4xf32>
    %cst_51 = arith.constant 0.000000e+00 : f32
    %88 = vector.broadcast %cst_51 : f32 to vector<128x4xf32>
    %89 = arith.maximumf %87, %88 : vector<128x4xf32>
    %90 = arith.truncf %89 : vector<128x4xf32> to vector<128x4xbf16>
    %c0_52 = arith.constant 0 : index
    %c0_53 = arith.constant 0 : index
    %91 = vector.load %arg9[%c0_52, %c0_53] : memref<4x16xbf16, #tpu.memory_space<vmem>>, vector<4x16xbf16>
    %cst_54 = arith.constant dense<0.000000e+00> : vector<128x16xf32>
    %92 = tpu.matmul %90, %91, %cst_54 {dimension_numbers = #tpu.dot_dimension_numbers<[1], [0], [0], [1], [0, 0, 1, 1], [], []>} : vector<128x4xbf16>, vector<4x16xbf16>, vector<128x16xf32> -> vector<128x16xf32>
    %c0_55 = arith.constant 0 : index
    %c0_56 = arith.constant 0 : index
    %93 = vector.load %arg10[%c0_55, %c0_56] : memref<1x16xf32, #tpu.memory_space<vmem>>, vector<1x16xf32>
    %94 = vector.broadcast %93 : vector<1x16xf32> to vector<128x16xf32>
    %95 = arith.mulf %92, %94 : vector<128x16xf32>
    %c0_57 = arith.constant 0 : index
    %c0_58 = arith.constant 0 : index
    %96 = vector.load %arg11[%c0_57, %c0_58] : memref<1x16xf32, #tpu.memory_space<vmem>>, vector<1x16xf32>
    %97 = vector.broadcast %96 : vector<1x16xf32> to vector<128x16xf32>
    %98 = arith.addf %95, %97 : vector<128x16xf32>
    %99 = vector.shape_cast %4 : vector<8x16x8xbf16> to vector<128x8xbf16>
    %c0_59 = arith.constant 0 : index
    %c0_60 = arith.constant 0 : index
    %100 = vector.load %arg12[%c0_59, %c0_60] : memref<8x16xbf16, #tpu.memory_space<vmem>>, vector<8x16xbf16>
    %cst_61 = arith.constant dense<0.000000e+00> : vector<128x16xf32>
    %101 = tpu.matmul %99, %100, %cst_61 {dimension_numbers = #tpu.dot_dimension_numbers<[1], [0], [0], [1], [0, 0, 1, 1], [], []>} : vector<128x8xbf16>, vector<8x16xbf16>, vector<128x16xf32> -> vector<128x16xf32>
    %c0_62 = arith.constant 0 : index
    %c0_63 = arith.constant 0 : index
    %102 = vector.load %arg13[%c0_62, %c0_63] : memref<1x16xf32, #tpu.memory_space<vmem>>, vector<1x16xf32>
    %103 = vector.broadcast %102 : vector<1x16xf32> to vector<128x16xf32>
    %104 = arith.mulf %101, %103 : vector<128x16xf32>
    %c0_64 = arith.constant 0 : index
    %c0_65 = arith.constant 0 : index
    %105 = vector.load %arg14[%c0_64, %c0_65] : memref<1x16xf32, #tpu.memory_space<vmem>>, vector<1x16xf32>
    %106 = vector.broadcast %105 : vector<1x16xf32> to vector<128x16xf32>
    %107 = arith.addf %104, %106 : vector<128x16xf32>
    %108 = arith.addf %98, %107 : vector<128x16xf32>
    %cst_66 = arith.constant 0.000000e+00 : f32
    %109 = vector.broadcast %cst_66 : f32 to vector<128x16xf32>
    %110 = arith.maximumf %108, %109 : vector<128x16xf32>
    %111 = vector.shape_cast %110 : vector<128x16xf32> to vector<8x16x16xf32>
    %c0_67 = arith.constant 0 : index
    %c0_68 = arith.constant 0 : index
    %c0_69 = arith.constant 0 : index
    %c0_70 = arith.constant 0 : index
    %112 = vector.load %arg15[%c0_67, %c0_68, %c0_69, %c0_70] : memref<1x8x16x16xf32, #tpu.memory_space<vmem>>, vector<1x8x16x16xf32>
    %113 = vector.shape_cast %112 : vector<1x8x16x16xf32> to vector<8x16x16xf32>
    %114 = vector.shape_cast %111 : vector<8x16x16xf32> to vector<1x8x16x16xf32>
    tpu.vector_store %arg15[%c0_67, %c0_68, %c0_69, %c0_70], %114 {strides = array<i32>} : memref<1x8x16x16xf32, #tpu.memory_space<vmem>>, vector<1x8x16x16xf32>,
    return
  }
  func.func @transform_0(%arg0: i32, %arg1: i32) -> (i32, i32, i32, i32) {
    %c0_i32 = arith.constant 0 : i32
    %c0_i32_0 = arith.constant 0 : i32
    %c0_i32_1 = arith.constant 0 : i32
    %c0_i32_2 = arith.constant 0 : i32
    return %arg0, %c0_i32, %c0_i32_0, %c0_i32_1 : i32, i32, i32, i32
  }
  func.func @transform_1(%arg0: i32, %arg1: i32) -> (i32, i32) {
    %c0_i32 = arith.constant 0 : i32
    %c0_i32_0 = arith.constant 0 : i32
    %c0_i32_1 = arith.constant 0 : i32
    return %c0_i32, %c0_i32_0 : i32, i32
  }
  func.func @transform_2(%arg0: i32, %arg1: i32) -> (i32, i32) {
    %c0_i32 = arith.constant 0 : i32
    %c0_i32_0 = arith.constant 0 : i32
    %c0_i32_1 = arith.constant 0 : i32
    return %c0_i32, %c0_i32_0 : i32, i32
  }
  func.func @transform_3(%arg0: i32, %arg1: i32) -> (i32, i32) {
    %c0_i32 = arith.constant 0 : i32
    %c0_i32_0 = arith.constant 0 : i32
    %c0_i32_1 = arith.constant 0 : i32
    return %c0_i32, %c0_i32_0 : i32, i32
  }
  func.func @transform_4(%arg0: i32, %arg1: i32) -> (i32, i32, i32) {
    %c0_i32 = arith.constant 0 : i32
    %c0_i32_0 = arith.constant 0 : i32
    %c0_i32_1 = arith.constant 0 : i32
    %c0_i32_2 = arith.constant 0 : i32
    return %c0_i32, %c0_i32_0, %c0_i32_1 : i32, i32, i32
  }
  func.func @transform_5(%arg0: i32, %arg1: i32) -> (i32, i32) {
    %c0_i32 = arith.constant 0 : i32
    %c0_i32_0 = arith.constant 0 : i32
    %c0_i32_1 = arith.constant 0 : i32
    return %c0_i32, %c0_i32_0 : i32, i32
  }
  func.func @transform_6(%arg0: i32, %arg1: i32) -> (i32, i32) {
    %c0_i32 = arith.constant 0 : i32
    %c0_i32_0 = arith.constant 0 : i32
    %c0_i32_1 = arith.constant 0 : i32
    return %c0_i32, %c0_i32_0 : i32, i32
  }
  func.func @transform_7(%arg0: i32, %arg1: i32) -> (i32, i32) {
    %c0_i32 = arith.constant 0 : i32
    %c0_i32_0 = arith.constant 0 : i32
    %c0_i32_1 = arith.constant 0 : i32
    return %c0_i32, %c0_i32_0 : i32, i32
  }
  func.func @transform_8(%arg0: i32, %arg1: i32) -> (i32, i32) {
    %c0_i32 = arith.constant 0 : i32
    %c0_i32_0 = arith.constant 0 : i32
    %c0_i32_1 = arith.constant 0 : i32
    return %c0_i32, %c0_i32_0 : i32, i32
  }
  func.func @transform_9(%arg0: i32, %arg1: i32) -> (i32, i32) {
    %c0_i32 = arith.constant 0 : i32
    %c0_i32_0 = arith.constant 0 : i32
    %c0_i32_1 = arith.constant 0 : i32
    return %c0_i32, %c0_i32_0 : i32, i32
  }
  func.func @transform_10(%arg0: i32, %arg1: i32) -> (i32, i32) {
    %c0_i32 = arith.constant 0 : i32
    %c0_i32_0 = arith.constant 0 : i32
    %c0_i32_1 = arith.constant 0 : i32
    return %c0_i32, %c0_i32_0 : i32, i32
  }
  func.func @transform_11(%arg0: i32, %arg1: i32) -> (i32, i32) {
    %c0_i32 = arith.constant 0 : i32
    %c0_i32_0 = arith.constant 0 : i32
    %c0_i32_1 = arith.constant 0 : i32
    return %c0_i32, %c0_i32_0 : i32, i32
  }
  func.func @transform_12(%arg0: i32, %arg1: i32) -> (i32, i32) {
    %c0_i32 = arith.constant 0 : i32
    %c0_i32_0 = arith.constant 0 : i32
    %c0_i32_1 = arith.constant 0 : i32
    return %c0_i32, %c0_i32_0 : i32, i32
  }
  func.func @transform_13(%arg0: i32, %arg1: i32) -> (i32, i32, i32, i32) {
    %c0_i32 = arith.constant 0 : i32
    %c0_i32_0 = arith.constant 0 : i32
    %c0_i32_1 = arith.constant 0 : i32
    return %arg0, %arg1, %c0_i32, %c0_i32_0 : i32, i32, i32, i32
  }
}

</mosaic_0001>

<llo_original>
// kernel: tpu_custom_call.1
$region0: #{tpu_custom_call.1}
  #allocation0 [shape = 'u32[]', space=smem, size = 0x4, offset = 0x4, fixed_abs, tag = 'smem constant byte address 0x4 - core index']
  #allocation1 [shape = 'u32[72,128]{1,0:T(1,128)}', space=vmem, size = 0x9000, scoped, tag = 'internal scratch']
  %s0 = inlined_call_operand.vmem [shape: bf16[2,16,16,8], index: 0, kind: input, shape index: {}]
  %s1 = inlined_call_operand.vmem [shape: bf16[8,4], index: 1, kind: input, shape index: {}]
  %s2 = inlined_call_operand.vmem [shape: f32[1,4], index: 2, kind: input, shape index: {}]
  %s3 = inlined_call_operand.vmem [shape: f32[1,4], index: 3, kind: input, shape index: {}]
  %s4 = inlined_call_operand.vmem [shape: bf16[3,12,4], index: 4, kind: input, shape index: {}]
  %s5 = inlined_call_operand.vmem [shape: f32[1,4], index: 5, kind: input, shape index: {}]
  %s6 = inlined_call_operand.vmem [shape: f32[1,4], index: 6, kind: input, shape index: {}]
  %s7 = inlined_call_operand.vmem [shape: bf16[4,16], index: 7, kind: input, shape index: {}]
  %s8 = inlined_call_operand.vmem [shape: f32[1,16], index: 8, kind: input, shape index: {}]
  %s9 = inlined_call_operand.vmem [shape: f32[1,16], index: 9, kind: input, shape index: {}]
  %s10 = inlined_call_operand.vmem [shape: bf16[8,16], index: 10, kind: input, shape index: {}]
  %s11 = inlined_call_operand.vmem [shape: f32[1,16], index: 11, kind: input, shape index: {}]
  %s12 = inlined_call_operand.vmem [shape: f32[1,16], index: 12, kind: input, shape index: {}]
  %s13 = inlined_call_operand.hbm [shape: f32[2,16,16,16], index: 13, kind: output, shape index: {}]
  %s14 = sld [smem:[#allocation0]]
  $region85: #{tpu_custom_call.1} parent=0
    _
  %s16 = ssub.s32 1, %s14
  %s17 = scalar_select 0, %s16, %s14
  $region1: #{tpu_custom_call.1} parent=0
    #allocation2 [shape = 'u8[131072]{0}', space=vmem, size = 0x20000, scoped, tag = 'output window, operand 0']
    #allocation3 [shape = 's32[2]{0}', space=sflag, size = 0x8, scoped, tag = 'scoped memory for tpu_custom_call.1']
    %18 = vsyncpa [#allocation3], 0
    %s19 = scalar_lea.sflag [#allocation3], 1
    %20 = vsyncpa %s19, 0
    loop: start=0, step=1, limit=6
    $region2: #{tpu_custom_call.1} parent=1 // loop_pre_header
      _
    $region3: #{tpu_custom_call.1} parent=1 // loop_header
      %s22 = sphi 0, %s26
      %p23 = scmp.ge.s32.totalorder %s22, 6
      %s29 = sphi 0, %s41
      %s30 = sphi 0, %s37
      %s31 = sphi 0, %s29
      %s32 = sphi 0, %s30
      %s33 = sphi 0, %s31
      %s34 = sphi 0, %s32
      %s44 = sphi 0, %s46
      %s47 = sphi 0, %s44
      %s48 = sphi 0, %s47
      %s64 = sphi 0, %s48
      %s68 = sphi 0, %s68
      %s70 = sphi 0, %s68
      %s71 = sphi 0, %s70
      %s85 = sphi 0, %s71
      %s89 = sphi 0, %s89
      %s91 = sphi 0, %s89
      %s92 = sphi 0, %s91
      %s106 = sphi 0, %s92
      %s110 = sphi 0, %s110
      %s112 = sphi 0, %s110
      %s113 = sphi 0, %s112
      %s127 = sphi 0, %s113
      %s131 = sphi 0, %s131
      %s133 = sphi 0, %s131
      %s134 = sphi 0, %s133
      %s148 = sphi 0, %s134
      %s152 = sphi 0, %s152
      %s154 = sphi 0, %s152
      %s155 = sphi 0, %s154
      %s169 = sphi 0, %s155
      %s173 = sphi 0, %s173
      %s175 = sphi 0, %s173
      %s176 = sphi 0, %s175
      %s190 = sphi 0, %s176
      %s194 = sphi 0, %s194
      %s196 = sphi 0, %s194
      %s197 = sphi 0, %s196
      %s211 = sphi 0, %s197
      %s215 = sphi 0, %s215
      %s217 = sphi 0, %s215
      %s218 = sphi 0, %s217
      %s232 = sphi 0, %s218
      %s236 = sphi 0, %s236
      %s238 = sphi 0, %s236
      %s239 = sphi 0, %s238
      %s253 = sphi 0, %s239
      %s257 = sphi 0, %s257
      %s259 = sphi 0, %s257
      %s260 = sphi 0, %s259
      %s274 = sphi 0, %s260
      %s278 = sphi 0, %s278
      %s280 = sphi 0, %s278
      %s281 = sphi 0, %s280
      %s295 = sphi 0, %s281
      %s299 = sphi 0, %s299
      %s301 = sphi 0, %s299
      %s302 = sphi 0, %s301
      %s316 = sphi 0, %s302
      %s324 = sphi 0, %s326
      %s327 = sphi 0, %s324
      %s328 = sphi 0, %s327
      %s344 = sphi 0, %s328
    $region4: #{tpu_custom_call.1} parent=1 // loop_header_branch
      %25 = sbr.rel (%p23) target = $region8
    $region5: #{tpu_custom_call.1} parent=1 // loop_body
      %s27 = ssub.s32 %s22, 1
      %s28 = ssub.s32 %s22, 2
      %s35 = sadd.s32 1, %s30
      %p36 = scmp.ge.s32.totalorder %s35, 2
      %s37 = scalar_select %p36, 0, %s35
      %s38 = sadd.s32 1, %s29
      %s39 = scalar_select %p36, %s38, %s29
      %p40 = scmp.ge.s32.totalorder %s39, 2
      %s41 = scalar_select %p40, 0, %s39
      %s42 = ssub.s32 %s29, %s41
      %p43 = scmp.eq.s32.totalorder %s42, 0
      %s45 = sadd.s32 %s44, 1
      %s46 = scalar_select %p43, %s44, %s45
      %p49 = pneg %p43
      %p50 = scmp.eq.s32.totalorder %s22, 3
      %p51 = por %p49, %p50
      %p52 = scmp.ne.s32.totalorder %s44, %s47
      %p53 = scmp.eq.s32.totalorder %s22, 0
      %p54 = por %p52, %p53
      %p55 = scmp.ne.s32.totalorder %s44, %s47
      %p56 = scmp.eq.s32.totalorder %s27, 3
      %p57 = por %p55, %p56
      %p58 = scmp.ne.s32.totalorder %s47, %s48
      %p59 = scmp.eq.s32.totalorder %s27, 0
      %p60 = por %p58, %p59
      %p61 = scmp.ne.s32.totalorder %s47, %s48
      %p62 = scmp.eq.s32.totalorder %s28, 3
      %p63 = por %p61, %p62
      %p65 = scmp.ne.s32.totalorder %s48, %s64
      %p66 = scmp.eq.s32.totalorder %s28, 0
      %p67 = por %p65, %p66
      %s69 = sadd.s32 %s68, 1
      %p72 = scmp.eq.s32.totalorder %s22, 3
      %p73 = scmp.ne.s32.totalorder %s68, %s70
      %p74 = scmp.eq.s32.totalorder %s22, 0
      %p75 = por %p73, %p74
      %p76 = scmp.ne.s32.totalorder %s68, %s70
      %p77 = scmp.eq.s32.totalorder %s27, 3
      %p78 = por %p76, %p77
      %p79 = scmp.ne.s32.totalorder %s70, %s71
      %p80 = scmp.eq.s32.totalorder %s27, 0
      %p81 = por %p79, %p80
      %p82 = scmp.ne.s32.totalorder %s70, %s71
      %p83 = scmp.eq.s32.totalorder %s28, 3
      %p84 = por %p82, %p83
      %p86 = scmp.ne.s32.totalorder %s71, %s85
      %p87 = scmp.eq.s32.totalorder %s28, 0
      %p88 = por %p86, %p87
      %s90 = sadd.s32 %s89, 1
      %p93 = scmp.eq.s32.totalorder %s22, 3
      %p94 = scmp.ne.s32.totalorder %s89, %s91
      %p95 = scmp.eq.s32.totalorder %s22, 0
      %p96 = por %p94, %p95
      %p97 = scmp.ne.s32.totalorder %s89, %s91
      %p98 = scmp.eq.s32.totalorder %s27, 3
      %p99 = por %p97, %p98
      %p100 = scmp.ne.s32.totalorder %s91, %s92
      %p101 = scmp.eq.s32.totalorder %s27, 0
      %p102 = por %p100, %p101
      %p103 = scmp.ne.s32.totalorder %s91, %s92
      %p104 = scmp.eq.s32.totalorder %s28, 3
      %p105 = por %p103, %p104
      %p107 = scmp.ne.s32.totalorder %s92, %s106
      %p108 = scmp.eq.s32.totalorder %s28, 0
      %p109 = por %p107, %p108
      %s111 = sadd.s32 %s110, 1
      %p114 = scmp.eq.s32.totalorder %s22, 3
      %p115 = scmp.ne.s32.totalorder %s110, %s112
      %p116 = scmp.eq.s32.totalorder %s22, 0
      %p117 = por %p115, %p116
      %p118 = scmp.ne.s32.totalorder %s110, %s112
      %p119 = scmp.eq.s32.totalorder %s27, 3
      %p120 = por %p118, %p119
      %p121 = scmp.ne.s32.totalorder %s112, %s113
      %p122 = scmp.eq.s32.totalorder %s27, 0
      %p123 = por %p121, %p122
      %p124 = scmp.ne.s32.totalorder %s112, %s113
      %p125 = scmp.eq.s32.totalorder %s28, 3
      %p126 = por %p124, %p125
      %p128 = scmp.ne.s32.totalorder %s113, %s127
      %p129 = scmp.eq.s32.totalorder %s28, 0
      %p130 = por %p128, %p129
      %s132 = sadd.s32 %s131, 1
      %p135 = scmp.eq.s32.totalorder %s22, 3
      %p136 = scmp.ne.s32.totalorder %s131, %s133
      %p137 = scmp.eq.s32.totalorder %s22, 0
      %p138 = por %p136, %p137
      %p139 = scmp.ne.s32.totalorder %s131, %s133
      %p140 = scmp.eq.s32.totalorder %s27, 3
      %p141 = por %p139, %p140
      %p142 = scmp.ne.s32.totalorder %s133, %s134
      %p143 = scmp.eq.s32.totalorder %s27, 0
      %p144 = por %p142, %p143
      %p145 = scmp.ne.s32.totalorder %s133, %s134
      %p146 = scmp.eq.s32.totalorder %s28, 3
      %p147 = por %p145, %p146
      %p149 = scmp.ne.s32.totalorder %s134, %s148
      %p150 = scmp.eq.s32.totalorder %s28, 0
      %p151 = por %p149, %p150
      %s153 = sadd.s32 %s152, 1
      %p156 = scmp.eq.s32.totalorder %s22, 3
      %p157 = scmp.ne.s32.totalorder %s152, %s154
      %p158 = scmp.eq.s32.totalorder %s22, 0
      %p159 = por %p157, %p158
      %p160 = scmp.ne.s32.totalorder %s152, %s154
      %p161 = scmp.eq.s32.totalorder %s27, 3
      %p162 = por %p160, %p161
      %p163 = scmp.ne.s32.totalorder %s154, %s155
      %p164 = scmp.eq.s32.totalorder %s27, 0
      %p165 = por %p163, %p164
      %p166 = scmp.ne.s32.totalorder %s154, %s155
      %p167 = scmp.eq.s32.totalorder %s28, 3
      %p168 = por %p166, %p167
      %p170 = scmp.ne.s32.totalorder %s155, %s169
      %p171 = scmp.eq.s32.totalorder %s28, 0
      %p172 = por %p170, %p171
      %s174 = sadd.s32 %s173, 1
      %p177 = scmp.eq.s32.totalorder %s22, 3
      %p178 = scmp.ne.s32.totalorder %s173, %s175
      %p179 = scmp.eq.s32.totalorder %s22, 0
      %p180 = por %p178, %p179
      %p181 = scmp.ne.s32.totalorder %s173, %s175
      %p182 = scmp.eq.s32.totalorder %s27, 3
      %p183 = por %p181, %p182
      %p184 = scmp.ne.s32.totalorder %s175, %s176
      %p185 = scmp.eq.s32.totalorder %s27, 0
      %p186 = por %p184, %p185
      %p187 = scmp.ne.s32.totalorder %s175, %s176
      %p188 = scmp.eq.s32.totalorder %s28, 3
      %p189 = por %p187, %p188
      %p191 = scmp.ne.s32.totalorder %s176, %s190
      %p192 = scmp.eq.s32.totalorder %s28, 0
      %p193 = por %p191, %p192
      %s195 = sadd.s32 %s194, 1
      %p198 = scmp.eq.s32.totalorder %s22, 3
      %p199 = scmp.ne.s32.totalorder %s194, %s196
      %p200 = scmp.eq.s32.totalorder %s22, 0
      %p201 = por %p199, %p200
      %p202 = scmp.ne.s32.totalorder %s194, %s196
      %p203 = scmp.eq.s32.totalorder %s27, 3
      %p204 = por %p202, %p203
      %p205 = scmp.ne.s32.totalorder %s196, %s197
      %p206 = scmp.eq.s32.totalorder %s27, 0
      %p207 = por %p205, %p206
      %p208 = scmp.ne.s32.totalorder %s196, %s197
      %p209 = scmp.eq.s32.totalorder %s28, 3
      %p210 = por %p208, %p209
      %p212 = scmp.ne.s32.totalorder %s197, %s211
      %p213 = scmp.eq.s32.totalorder %s28, 0
      %p214 = por %p212, %p213
      %s216 = sadd.s32 %s215, 1
      %p219 = scmp.eq.s32.totalorder %s22, 3
      %p220 = scmp.ne.s32.totalorder %s215, %s217
      %p221 = scmp.eq.s32.totalorder %s22, 0
      %p222 = por %p220, %p221
      %p223 = scmp.ne.s32.totalorder %s215, %s217
      %p224 = scmp.eq.s32.totalorder %s27, 3
      %p225 = por %p223, %p224
      %p226 = scmp.ne.s32.totalorder %s217, %s218
      %p227 = scmp.eq.s32.totalorder %s27, 0
      %p228 = por %p226, %p227
      %p229 = scmp.ne.s32.totalorder %s217, %s218
      %p230 = scmp.eq.s32.totalorder %s28, 3
      %p231 = por %p229, %p230
      %p233 = scmp.ne.s32.totalorder %s218, %s232
      %p234 = scmp.eq.s32.totalorder %s28, 0
      %p235 = por %p233, %p234
      %s237 = sadd.s32 %s236, 1
      %p240 = scmp.eq.s32.totalorder %s22, 3
      %p241 = scmp.ne.s32.totalorder %s236, %s238
      %p242 = scmp.eq.s32.totalorder %s22, 0
      %p243 = por %p241, %p242
      %p244 = scmp.ne.s32.totalorder %s236, %s238
      %p245 = scmp.eq.s32.totalorder %s27, 3
      %p246 = por %p244, %p245
      %p247 = scmp.ne.s32.totalorder %s238, %s239
      %p248 = scmp.eq.s32.totalorder %s27, 0
      %p249 = por %p247, %p248
      %p250 = scmp.ne.s32.totalorder %s238, %s239
      %p251 = scmp.eq.s32.totalorder %s28, 3
      %p252 = por %p250, %p251
      %p254 = scmp.ne.s32.totalorder %s239, %s253
      %p255 = scmp.eq.s32.totalorder %s28, 0
      %p256 = por %p254, %p255
      %s258 = sadd.s32 %s257, 1
      %p261 = scmp.eq.s32.totalorder %s22, 3
      %p262 = scmp.ne.s32.totalorder %s257, %s259
      %p263 = scmp.eq.s32.totalorder %s22, 0
      %p264 = por %p262, %p263
      %p265 = scmp.ne.s32.totalorder %s257, %s259
      %p266 = scmp.eq.s32.totalorder %s27, 3
      %p267 = por %p265, %p266
      %p268 = scmp.ne.s32.totalorder %s259, %s260
      %p269 = scmp.eq.s32.totalorder %s27, 0
      %p270 = por %p268, %p269
      %p271 = scmp.ne.s32.totalorder %s259, %s260
      %p272 = scmp.eq.s32.totalorder %s28, 3
      %p273 = por %p271, %p272
      %p275 = scmp.ne.s32.totalorder %s260, %s274
      %p276 = scmp.eq.s32.totalorder %s28, 0
      %p277 = por %p275, %p276
      %s279 = sadd.s32 %s278, 1
      %p282 = scmp.eq.s32.totalorder %s22, 3
      %p283 = scmp.ne.s32.totalorder %s278, %s280
      %p284 = scmp.eq.s32.totalorder %s22, 0
      %p285 = por %p283, %p284
      %p286 = scmp.ne.s32.totalorder %s278, %s280
      %p287 = scmp.eq.s32.totalorder %s27, 3
      %p288 = por %p286, %p287
      %p289 = scmp.ne.s32.totalorder %s280, %s281
      %p290 = scmp.eq.s32.totalorder %s27, 0
      %p291 = por %p289, %p290
      %p292 = scmp.ne.s32.totalorder %s280, %s281
      %p293 = scmp.eq.s32.totalorder %s28, 3
      %p294 = por %p292, %p293
      %p296 = scmp.ne.s32.totalorder %s281, %s295
      %p297 = scmp.eq.s32.totalorder %s28, 0
      %p298 = por %p296, %p297
      %s300 = sadd.s32 %s299, 1
      %p303 = scmp.eq.s32.totalorder %s22, 3
      %p304 = scmp.ne.s32.totalorder %s299, %s301
      %p305 = scmp.eq.s32.totalorder %s22, 0
      %p306 = por %p304, %p305
      %p307 = scmp.ne.s32.totalorder %s299, %s301
      %p308 = scmp.eq.s32.totalorder %s27, 3
      %p309 = por %p307, %p308
      %p310 = scmp.ne.s32.totalorder %s301, %s302
      %p311 = scmp.eq.s32.totalorder %s27, 0
      %p312 = por %p310, %p311
      %p313 = scmp.ne.s32.totalorder %s301, %s302
      %p314 = scmp.eq.s32.totalorder %s28, 3
      %p315 = por %p313, %p314
      %p317 = scmp.ne.s32.totalorder %s302, %s316
      %p318 = scmp.eq.s32.totalorder %s28, 0
      %p319 = por %p317, %p318
      %s320 = ssub.s32 %s29, %s41
      %s321 = ssub.s32 %s30, %s37
      %s322 = sor.u32 %s320, %s321
      %p323 = scmp.eq.s32.totalorder %s322, 0
      %s325 = sadd.s32 %s324, 1
      %s326 = scalar_select %p323, %s324, %s325
      %p329 = pneg %p323
      %p330 = scmp.eq.s32.totalorder %s22, 3
      %p331 = por %p329, %p330
      %p332 = scmp.ne.s32.totalorder %s324, %s327
      %p333 = scmp.eq.s32.totalorder %s22, 0
      %p334 = por %p332, %p333
      %p335 = scmp.ne.s32.totalorder %s324, %s327
      %p336 = scmp.eq.s32.totalorder %s27, 3
      %p337 = por %p335, %p336
      %p338 = scmp.ne.s32.totalorder %s327, %s328
      %p339 = scmp.eq.s32.totalorder %s27, 0
      %p340 = por %p338, %p339
      %p341 = scmp.ne.s32.totalorder %s327, %s328
      %p342 = scmp.eq.s32.totalorder %s28, 3
      %p343 = por %p341, %p342
      %p345 = scmp.ne.s32.totalorder %s328, %s344
      %p346 = scmp.eq.s32.totalorder %s28, 0
      %p347 = por %p345, %p346
      %p348 = scmp.le.s32.totalorder 1, %s22
      %p349 = scmp.lt.s32.totalorder %s22, 5
      %p350 = pnand %p348, %p349
      %p351 = pneg %p350
      // Predicated region
      $region9: #{tpu_custom_call.1} parent=5 // pred_check
        _
      $region10: #{tpu_custom_call.1} parent=5 // pred_check_branch
        %353 = sbr.rel (%p350) target = $region12
      $region11: #{tpu_custom_call.1} parent=5 // pred_region
        %s354 = ssub.s32 %s22, 1
        // Predicated region
        $region13: #{tpu_custom_call.1} parent=11 // pred_check
          %p355 = pneg %p81
        $region14: #{tpu_custom_call.1} parent=11 // pred_check_branch
          %357 = sbr.rel (%p355) target = $region16
        $region15: #{tpu_custom_call.1} parent=11 // pred_region
          _
        $region16: #{tpu_custom_call.1} parent=11 // pred_fallthru
          _
        // Predicated region
        $region17: #{tpu_custom_call.1} parent=11 // pred_check
          %p358 = pneg %p102
        $region18: #{tpu_custom_call.1} parent=11 // pred_check_branch
          %360 = sbr.rel (%p358) target = $region20
        $region19: #{tpu_custom_call.1} parent=11 // pred_region
          _
        $region20: #{tpu_custom_call.1} parent=11 // pred_fallthru
          _
        // Predicated region
        $region21: #{tpu_custom_call.1} parent=11 // pred_check
          %p361 = pneg %p123
        $region22: #{tpu_custom_call.1} parent=11 // pred_check_branch
          %363 = sbr.rel (%p361) target = $region24
        $region23: #{tpu_custom_call.1} parent=11 // pred_region
          _
        $region24: #{tpu_custom_call.1} parent=11 // pred_fallthru
          _
        // Predicated region
        $region25: #{tpu_custom_call.1} parent=11 // pred_check
          %p364 = pneg %p144
        $region26: #{tpu_custom_call.1} parent=11 // pred_check_branch
          %366 = sbr.rel (%p364) target = $region28
        $region27: #{tpu_custom_call.1} parent=11 // pred_region
          _
        $region28: #{tpu_custom_call.1} parent=11 // pred_fallthru
          _
        // Predicated region
        $region29: #{tpu_custom_call.1} parent=11 // pred_check
          %p367 = pneg %p165
        $region30: #{tpu_custom_call.1} parent=11 // pred_check_branch
          %369 = sbr.rel (%p367) target = $region32
        $region31: #{tpu_custom_call.1} parent=11 // pred_region
          _
        $region32: #{tpu_custom_call.1} parent=11 // pred_fallthru
          _
        // Predicated region
        $region33: #{tpu_custom_call.1} parent=11 // pred_check
          %p370 = pneg %p186
        $region34: #{tpu_custom_call.1} parent=11 // pred_check_branch
          %372 = sbr.rel (%p370) target = $region36
        $region35: #{tpu_custom_call.1} parent=11 // pred_region
          _
        $region36: #{tpu_custom_call.1} parent=11 // pred_fallthru
          _
        // Predicated region
        $region37: #{tpu_custom_call.1} parent=11 // pred_check
          %p373 = pneg %p207
        $region38: #{tpu_custom_call.1} parent=11 // pred_check_branch
          %375 = sbr.rel (%p373) target = $region40
        $region39: #{tpu_custom_call.1} parent=11 // pred_region
          _
        $region40: #{tpu_custom_call.1} parent=11 // pred_fallthru
          _
        // Predicated region
        $region41: #{tpu_custom_call.1} parent=11 // pred_check
          %p376 = pneg %p228
        $region42: #{tpu_custom_call.1} parent=11 // pred_check_branch
          %378 = sbr.rel (%p376) target = $region44
        $region43: #{tpu_custom_call.1} parent=11 // pred_region
          _
        $region44: #{tpu_custom_call.1} parent=11 // pred_fallthru
          _
        // Predicated region
        $region45: #{tpu_custom_call.1} parent=11 // pred_check
          %p379 = pneg %p249
        $region46: #{tpu_custom_call.1} parent=11 // pred_check_branch
          %381 = sbr.rel (%p379) target = $region48
        $region47: #{tpu_custom_call.1} parent=11 // pred_region
          _
        $region48: #{tpu_custom_call.1} parent=11 // pred_fallthru
          _
        // Predicated region
        $region49: #{tpu_custom_call.1} parent=11 // pred_check
          %p382 = pneg %p270
        $region50: #{tpu_custom_call.1} parent=11 // pred_check_branch
          %384 = sbr.rel (%p382) target = $region52
        $region51: #{tpu_custom_call.1} parent=11 // pred_region
          _
        $region52: #{tpu_custom_call.1} parent=11 // pred_fallthru
          _
        // Predicated region
        $region53: #{tpu_custom_call.1} parent=11 // pred_check
          %p385 = pneg %p291
        $region54: #{tpu_custom_call.1} parent=11 // pred_check_branch
          %387 = sbr.rel (%p385) target = $region56
        $region55: #{tpu_custom_call.1} parent=11 // pred_region
          _
        $region56: #{tpu_custom_call.1} parent=11 // pred_fallthru
          _
        // Predicated region
        $region57: #{tpu_custom_call.1} parent=11 // pred_check
          %p388 = pneg %p312
        $region58: #{tpu_custom_call.1} parent=11 // pred_check_branch
          %390 = sbr.rel (%p388) target = $region60
        $region59: #{tpu_custom_call.1} parent=11 // pred_region
          _
        $region60: #{tpu_custom_call.1} parent=11 // pred_fallthru
          _
      $region12: #{tpu_custom_call.1} parent=5 // pred_fallthru
        _
      %p391 = scmp.lt.s32.totalorder %s22, 4
      // Predicated region
      $region61: #{tpu_custom_call.1} parent=5 // pred_check
        %p392 = pneg %p391
      $region62: #{tpu_custom_call.1} parent=5 // pred_check_branch
        %394 = sbr.rel (%p392) target = $region64
      $region63: #{tpu_custom_call.1} parent=5 // pred_region
        // Predicated region
        $region65: #{tpu_custom_call.1} parent=63 // pred_check
          %p395 = pneg %p54
        $region66: #{tpu_custom_call.1} parent=63 // pred_check_branch
          %397 = sbr.rel (%p395) target = $region68
        $region67: #{tpu_custom_call.1} parent=63 // pred_region
          %p398 = scmp.lt.s32.totalorder %s29, 1
          %s399 = scalar_select %p398, %s29, 1
          %s400 = smul.addr %s399, 32
          %s401 = smul.addr %s400, 4
          %s402 = scalar_lea.vmem %s0, %s401
        $region68: #{tpu_custom_call.1} parent=63 // pred_fallthru
          _
      $region64: #{tpu_custom_call.1} parent=5 // pred_fallthru
        _
      %p403 = scmp.le.s32.totalorder 1, %s22
      %p404 = scmp.lt.s32.totalorder %s22, 5
      %p405 = pnand %p403, %p404
      %p406 = pneg %p405
      // Predicated region
      $region69: #{tpu_custom_call.1} parent=5 // pred_check
        _
      $region70: #{tpu_custom_call.1} parent=5 // pred_check_branch
        %408 = sbr.rel (%p405) target = $region72
      $region71: #{tpu_custom_call.1} parent=5 // pred_region
        %s409 = ssub.s32 %s22, 1
        %p410 = scmp.lt.s32.totalorder %s31, 1
        %s411 = scalar_select %p410, %s31, 1
        %s412 = smul.addr %s411, 32
        %s413 = smul.addr %s412, 4
        %s414 = scalar_lea.vmem %s0, %s413
        %p415 = pneg %p60
        %p416 = pneg %p57
        %p417 = pneg %p81
        %p418 = pneg %p78
        %p419 = pneg %p102
        %p420 = pneg %p99
        %p421 = pneg %p123
        %p422 = pneg %p120
        %p423 = pneg %p144
        %p424 = pneg %p141
        %p425 = pneg %p165
        %p426 = pneg %p162
        %p427 = pneg %p186
        %p428 = pneg %p183
        %p429 = pneg %p207
        %p430 = pneg %p204
        %p431 = pneg %p228
        %p432 = pneg %p225
        %p433 = pneg %p249
        %p434 = pneg %p246
        %p435 = pneg %p270
        %p436 = pneg %p267
        %p437 = pneg %p291
        %p438 = pneg %p288
        %p439 = pneg %p312
        %p440 = pneg %p309
        %p441 = pneg %p340
        %p442 = pneg %p337
        %s443 = sand.u32 %s327, 1
        %s444 = scalar_lea.sflag [#allocation3], %s443
        %s445 = sand.u32 %s327, 1
        %s446 = smul.addr %s445, 128
        %s447 = scalar_lea.vmem [#allocation2], %s446
        %p448 = scmp.lt.s32.totalorder %s31, 1
        %s449 = scalar_select %p448, %s31, 1
        %s450 = smul.addr %s449, 32
        %s451 = smul.addr %s450, 4
        %s452 = scalar_lea.vmem %s0, %s451
        %s453 = smul.u32 8, %s32
        %s455 = smul.u32 %s32, 8
        %s456 = smul.u32 %s455, 2
        %s457 = smul.addr %s456, 4
        %s458 = scalar_lea.vmem %s452, %s457
        %v459 = vld [vmem:[%s458] sm:$0xf]
        %v460 = vld [vmem:[%s458 + $0x4] sm:$0xf]
        %v461 = vld [vmem:[%s458 + $0x8] sm:$0xf]
        %v462 = vld [vmem:[%s458 + $0xc] sm:$0xf]
        %v463 = vld [vmem:[%s458 + $0x10] sm:$0xf]
        %v464 = vld [vmem:[%s458 + $0x14] sm:$0xf]
        %v465 = vld [vmem:[%s458 + $0x18] sm:$0xf]
        %v466 = vld [vmem:[%s458 + $0x1c] sm:$0xf]
        %v467 = vld [vmem:[%s458 + $0x20] sm:$0xf]
        %v468 = vld [vmem:[%s458 + $0x24] sm:$0xf]
        %v469 = vld [vmem:[%s458 + $0x28] sm:$0xf]
        %v470 = vld [vmem:[%s458 + $0x2c] sm:$0xf]
        %v471 = vld [vmem:[%s458 + $0x30] sm:$0xf]
        %v472 = vld [vmem:[%s458 + $0x34] sm:$0xf]
        %v473 = vld [vmem:[%s458 + $0x38] sm:$0xf]
        %v474 = vld [vmem:[%s458 + $0x3c] sm:$0xf]
        %s475 = ssub.s32 %s455, 1
        %p476 = scmp.gt.s32.totalorder %s475, 0
        %s477 = scalar_select %p476, %s475, 0
        %s478 = smul.u32 %s477, 2
        %s479 = smul.addr %s478, 4
        %s480 = scalar_lea.vmem %s452, %s479
        %v481 = vld [vmem:[%s480] sm:$0xf]
        %v482 = vld [vmem:[%s480 + $0x4] sm:$0xf]
        %s483 = sadd.s32 %s455, 8
        %p484 = scmp.lt.s32.totalorder %s483, 15
        %s485 = scalar_select %p484, %s483, 15
        %s486 = smul.u32 %s485, 2
        %s487 = smul.addr %s486, 4
        %s488 = scalar_lea.vmem %s452, %s487
        %v489 = vld [vmem:[%s488] sm:$0xf]
        %v490 = vld [vmem:[%s488 + $0x4] sm:$0xf]
        %v491 = vld [vmem:[%s1] sm:$0xf]
        %v508 = vunpack.c.l.b16 %v459
        %v509 = vunpack.c.l.b16 %v460
        %v510 = vunpack.c.l.b16 %v461
        %v511 = vunpack.c.l.b16 %v462
        %v512 = vunpack.c.l.b16 %v463
        %v513 = vunpack.c.l.b16 %v464
        %v514 = vunpack.c.l.b16 %v465
        %v515 = vunpack.c.l.b16 %v466
        %v516 = vunpack.c.l.b16 %v467
        %v517 = vunpack.c.l.b16 %v468
        %v518 = vunpack.c.l.b16 %v469
        %v519 = vunpack.c.l.b16 %v470
        %v520 = vunpack.c.l.b16 %v471
        %v521 = vunpack.c.l.b16 %v472
        %v522 = vunpack.c.l.b16 %v473
        %v523 = vunpack.c.l.b16 %v474
        %v524 = vpack.c.b16 %v509, %v508
        %v525 = vpack.c.b16 %v511, %v510
        %v526 = vpack.c.b16 %v513, %v512
        %v527 = vpack.c.b16 %v515, %v514
        %v528 = vpack.c.b16 %v517, %v516
        %v529 = vpack.c.b16 %v519, %v518
        %v530 = vpack.c.b16 %v521, %v520
        %v531 = vpack.c.b16 %v523, %v522
        %vm532 = vcmask 64512
        %v534 = vsel %vm532, %v524, 0
        %v537 = vsel %vm532, %v525, 0
        %v540 = vsel %vm532, %v526, 0
        %v543 = vsel %vm532, %v527, 0
        %v546 = vsel %vm532, %v528, 0
        %v549 = vsel %vm532, %v529, 0
        %v552 = vsel %vm532, %v530, 0
        %v555 = vsel %vm532, %v531, 0
        %vm557 = vcmask 1043456
        %v559 = vsel %vm557, %v491, 0
        %561 = vmatpush.bf16.msra.mxu0 0
        %562 = vmatpush.bf16.msra.mxu0 0
        %563 = vmatpush.bf16.msra.mxu0 0
        %564 = vmatpush.bf16.msra.mxu0 0
        %565 = vmatpush.bf16.msra.mxu0 0
        %566 = vmatpush.bf16.msra.mxu0 0
        %567 = vmatpush.bf16.msra.mxu0 0
        %568 = vmatpush.bf16.msra.mxu0 %v559
        %569 = vmatmul.bf16.gmra.mxu0 %v534
        %v570 = vpop.f32.mrf.mxu0
        %v571 = vadd.f32 0.0, %v570
        %v572 = vpop.f32.mrf.mxu0
        %v573 = vadd.f32 0.0, %v572
        %574 = vmatmul.bf16.gmra.mxu0 %v537
        %v575 = vpop.f32.mrf.mxu0
        %v576 = vadd.f32 0.0, %v575
        %v577 = vpop.f32.mrf.mxu0
        %v578 = vadd.f32 0.0, %v577
        %579 = vmatmul.bf16.gmra.mxu0 %v540
        %v580 = vpop.f32.mrf.mxu0
        %v581 = vadd.f32 0.0, %v580
        %v582 = vpop.f32.mrf.mxu0
        %v583 = vadd.f32 0.0, %v582
        %584 = vmatmul.bf16.gmra.mxu0 %v543
        %v585 = vpop.f32.mrf.mxu0
        %v586 = vadd.f32 0.0, %v585
        %v587 = vpop.f32.mrf.mxu0
        %v588 = vadd.f32 0.0, %v587
        %589 = vmatmul.bf16.gmra.mxu0 %v546
        %v590 = vpop.f32.mrf.mxu0
        %v591 = vadd.f32 0.0, %v590
        %v592 = vpop.f32.mrf.mxu0
        %v593 = vadd.f32 0.0, %v592
        %594 = vmatmul.bf16.gmra.mxu0 %v549
        %v595 = vpop.f32.mrf.mxu0
        %v596 = vadd.f32 0.0, %v595
        %v597 = vpop.f32.mrf.mxu0
        %v598 = vadd.f32 0.0, %v597
        %599 = vmatmul.bf16.gmra.mxu0 %v552
        %v600 = vpop.f32.mrf.mxu0
        %v601 = vadd.f32 0.0, %v600
        %v602 = vpop.f32.mrf.mxu0
        %v603 = vadd.f32 0.0, %v602
        %604 = vmatmul.bf16.gmra.mxu0 %v555
        %v605 = vpop.f32.mrf.mxu0
        %v606 = vadd.f32 0.0, %v605
        %v607 = vpop.f32.mrf.mxu0
        %v608 = vadd.f32 0.0, %v607
        %609 = vdwg.mxu0
        %v610 = vld [vmem:[%s2] sm:$0x1]
        %v612 = vperm.slane %v610, 0
        %v614 = vmul.f32 %v571, %v612
        %v615 = vmul.f32 %v573, %v612
        %v616 = vmul.f32 %v576, %v612
        %v617 = vmul.f32 %v578, %v612
        %v618 = vmul.f32 %v581, %v612
        %v619 = vmul.f32 %v583, %v612
        %v620 = vmul.f32 %v586, %v612
        %v621 = vmul.f32 %v588, %v612
        %v622 = vmul.f32 %v591, %v612
        %v623 = vmul.f32 %v593, %v612
        %v624 = vmul.f32 %v596, %v612
        %v625 = vmul.f32 %v598, %v612
        %v626 = vmul.f32 %v601, %v612
        %v627 = vmul.f32 %v603, %v612
        %v628 = vmul.f32 %v606, %v612
        %v629 = vmul.f32 %v608, %v612
        %v630 = vld [vmem:[%s3] sm:$0x1]
        %v632 = vperm.slane %v630, 0
        %v634 = vadd.f32 %v614, %v632
        %v635 = vadd.f32 %v615, %v632
        %v636 = vadd.f32 %v616, %v632
        %v637 = vadd.f32 %v617, %v632
        %v638 = vadd.f32 %v618, %v632
        %v639 = vadd.f32 %v619, %v632
        %v640 = vadd.f32 %v620, %v632
        %v641 = vadd.f32 %v621, %v632
        %v642 = vadd.f32 %v622, %v632
        %v643 = vadd.f32 %v623, %v632
        %v644 = vadd.f32 %v624, %v632
        %v645 = vadd.f32 %v625, %v632
        %v646 = vadd.f32 %v626, %v632
        %v647 = vadd.f32 %v627, %v632
        %v648 = vadd.f32 %v628, %v632
        %v649 = vadd.f32 %v629, %v632
        %v650 = vmax.f32 %v634, 0.0
        %v651 = vmax.f32 %v635, 0.0
        %v652 = vmax.f32 %v636, 0.0
        %v653 = vmax.f32 %v637, 0.0
        %v654 = vmax.f32 %v638, 0.0
        %v655 = vmax.f32 %v639, 0.0
        %v656 = vmax.f32 %v640, 0.0
        %v657 = vmax.f32 %v641, 0.0
        %v658 = vmax.f32 %v642, 0.0
        %v659 = vmax.f32 %v643, 0.0
        %v660 = vmax.f32 %v644, 0.0
        %v661 = vmax.f32 %v645, 0.0
        %v662 = vmax.f32 %v646, 0.0
        %v663 = vmax.f32 %v647, 0.0
        %v664 = vmax.f32 %v648, 0.0
        %v665 = vmax.f32 %v649, 0.0
        %p666 = scmp.gt.s32.totalorder %s32, 0
        %v669 = vunpack.c.l.b16 %v481
        %v670 = vunpack.c.l.b16 %v482
        %v671 = vpack.c.b16 %v670, %v669
        %v673 = vsel %vm532, %v671, 0
        %675 = vmatpush.bf16.msra.mxu0 0
        %676 = vmatpush.bf16.msra.mxu0 0
        %677 = vmatpush.bf16.msra.mxu0 0
        %678 = vmatpush.bf16.msra.mxu0 0
        %679 = vmatpush.bf16.msra.mxu0 0
        %680 = vmatpush.bf16.msra.mxu0 0
        %681 = vmatpush.bf16.msra.mxu0 0
        %682 = vmatpush.bf16.msra.mxu0 %v559
        %683 = vmatmul.bf16.gmra.mxu0 %v673
        %v684 = vpop.f32.mrf.mxu0
        %v685 = vadd.f32 0.0, %v684
        %v686 = vpop.f32.mrf.mxu0
        %v687 = vadd.f32 0.0, %v686
        %688 = vdwg.mxu0
        %v689 = vmul.f32 %v685, %v612
        %v690 = vmul.f32 %v687, %v612
        %v691 = vadd.f32 %v689, %v632
        %v692 = vadd.f32 %v690, %v632
        %v693 = vmax.f32 %v691, 0.0
        %v694 = vmax.f32 %v692, 0.0
        %s695 = scalar_select %p666, 1, 0
        %v696 = vstv %s695
        %vm697 = vcmp.eq.s32.totalorder %v696, 1
        %v698 = vsel %vm697, %v693, 0.0
        %v699 = vsel %vm697, %v694, 0.0
        %p700 = scmp.lt.s32.totalorder %s32, 1
        %v703 = vunpack.c.l.b16 %v489
        %v704 = vunpack.c.l.b16 %v490
        %v705 = vpack.c.b16 %v704, %v703
        %v707 = vsel %vm532, %v705, 0
        %709 = vmatpush.bf16.msra.mxu0 0
        %710 = vmatpush.bf16.msra.mxu0 0
        %711 = vmatpush.bf16.msra.mxu0 0
        %712 = vmatpush.bf16.msra.mxu0 0
        %713 = vmatpush.bf16.msra.mxu0 0
        %714 = vmatpush.bf16.msra.mxu0 0
        %715 = vmatpush.bf16.msra.mxu0 0
        %716 = vmatpush.bf16.msra.mxu0 %v559
        %717 = vmatmul.bf16.gmra.mxu0 %v707
        %v718 = vpop.f32.mrf.mxu0
        %v719 = vadd.f32 0.0, %v718
        %v720 = vpop.f32.mrf.mxu0
        %v721 = vadd.f32 0.0, %v720
        %722 = vdwg.mxu0
        %v723 = vmul.f32 %v719, %v612
        %v724 = vmul.f32 %v721, %v612
        %v725 = vadd.f32 %v723, %v632
        %v726 = vadd.f32 %v724, %v632
        %v727 = vmax.f32 %v725, 0.0
        %v728 = vmax.f32 %v726, 0.0
        %s729 = scalar_select %p700, 1, 0
        %v730 = vstv %s729
        %vm731 = vcmp.eq.s32.totalorder %v730, 1
        %v732 = vsel %vm731, %v727, 0.0
        %v733 = vsel %vm731, %v728, 0.0
        %v734 = vpack.c.bf16 %v698, %v698
        %v735 = vpack.c.bf16 %v699, %v699
        %v736 = vpack.c.bf16 %v650, %v650
        %v737 = vpack.c.bf16 %v651, %v651
        %v738 = vpack.c.bf16 %v652, %v652
        %v739 = vpack.c.bf16 %v653, %v653
        %v740 = vpack.c.bf16 %v654, %v654
        %v741 = vpack.c.bf16 %v655, %v655
        %v742 = vpack.c.bf16 %v656, %v656
        %v743 = vpack.c.bf16 %v657, %v657
        %v744 = vpack.c.bf16 %v658, %v658
        %v745 = vpack.c.bf16 %v659, %v659
        %v746 = vpack.c.bf16 %v660, %v660
        %v747 = vpack.c.bf16 %v661, %v661
        %v748 = vpack.c.bf16 %v662, %v662
        %v749 = vpack.c.bf16 %v663, %v663
        %v750 = vpack.c.bf16 %v664, %v664
        %v751 = vpack.c.bf16 %v665, %v665
        %v752 = vpack.c.bf16 %v732, %v732
        %v753 = vpack.c.bf16 %v733, %v733
        %v774 = vunpack.c.l.b16 %v734
        %v775 = vunpack.c.l.b16 %v735
        %v776 = vunpack.c.l.b16 %v736
        %v777 = vunpack.c.l.b16 %v737
        %v778 = vunpack.c.l.b16 %v738
        %v779 = vunpack.c.l.b16 %v739
        %v780 = vunpack.c.l.b16 %v740
        %v781 = vunpack.c.l.b16 %v741
        %v782 = vunpack.c.l.b16 %v742
        %v783 = vunpack.c.l.b16 %v743
        %v784 = vunpack.c.l.b16 %v744
        %v785 = vunpack.c.l.b16 %v745
        %v786 = vunpack.c.l.b16 %v746
        %v787 = vunpack.c.l.b16 %v747
        %v788 = vunpack.c.l.b16 %v748
        %v789 = vunpack.c.l.b16 %v749
        %v790 = vunpack.c.l.b16 %v750
        %v791 = vunpack.c.l.b16 %v751
        %v792 = vunpack.c.l.b16 %v752
        %v793 = vunpack.c.l.b16 %v753
        %v794 = vpack.c.b16 %v775, %v774
        %v795 = vpack.c.b16 %v777, %v776
        %v796 = vpack.c.b16 %v779, %v778
        %v797 = vpack.c.b16 %v781, %v780
        %v798 = vpack.c.b16 %v783, %v782
        %v799 = vpack.c.b16 %v785, %v784
        %v800 = vpack.c.b16 %v787, %v786
        %v801 = vpack.c.b16 %v789, %v788
        %v802 = vpack.c.b16 %v791, %v790
        %v803 = vpack.c.b16 %v793, %v792
        %v805 = vshrl.u32 %v794, 16
        %v807 = vrot.slane %v805, 7
        %v808 = vshll.u32 %v794, 16
        %v810 = vor.u32 %v807, %v808
        %v812 = vshrl.u32 %v795, 16
        %v814 = vrot.slane %v812, 7
        %v815 = vshll.u32 %v795, 16
        %v817 = vor.u32 %v814, %v815
        %v819 = vshrl.u32 %v796, 16
        %v821 = vrot.slane %v819, 7
        %v822 = vshll.u32 %v796, 16
        %v824 = vor.u32 %v821, %v822
        %v826 = vshrl.u32 %v797, 16
        %v828 = vrot.slane %v826, 7
        %v829 = vshll.u32 %v797, 16
        %v831 = vor.u32 %v828, %v829
        %v833 = vshrl.u32 %v798, 16
        %v835 = vrot.slane %v833, 7
        %v836 = vshll.u32 %v798, 16
        %v838 = vor.u32 %v835, %v836
        %v840 = vshrl.u32 %v799, 16
        %v842 = vrot.slane %v840, 7
        %v843 = vshll.u32 %v799, 16
        %v845 = vor.u32 %v842, %v843
        %v847 = vshrl.u32 %v800, 16
        %v849 = vrot.slane %v847, 7
        %v850 = vshll.u32 %v800, 16
        %v852 = vor.u32 %v849, %v850
        %v854 = vshrl.u32 %v801, 16
        %v856 = vrot.slane %v854, 7
        %v857 = vshll.u32 %v801, 16
        %v859 = vor.u32 %v856, %v857
        %v861 = vshrl.u32 %v802, 16
        %v863 = vrot.slane %v861, 7
        %v864 = vshll.u32 %v802, 16
        %v866 = vor.u32 %v863, %v864
        %v868 = vshrl.u32 %v803, 16
        %v870 = vrot.slane %v868, 7
        %v871 = vshll.u32 %v803, 16
        %v873 = vor.u32 %v870, %v871
        %vm884 = vcmask 1040384
        %vm885 = vsmask.f32 256
        %vm886 = vmand %vm884, %vm885
        %v887 = vsel %vm886, 0, %v810
        %v888 = vsel %vm886, 0, %v817
        %v889 = vsel %vm886, 0, %v824
        %v890 = vsel %vm886, 0, %v831
        %v891 = vsel %vm886, 0, %v838
        %v892 = vsel %vm886, 0, %v845
        %v893 = vsel %vm886, 0, %v852
        %v894 = vsel %vm886, 0, %v859
        %v895 = vsel %vm886, 0, %v866
        %v896 = vsel %vm886, 0, %v873
        %v897 = vrot.slane %v808, 1
        %v898 = vor.u32 %v805, %v897
        %v899 = vrot.slane %v815, 1
        %v900 = vor.u32 %v812, %v899
        %v901 = vrot.slane %v822, 1
        %v902 = vor.u32 %v819, %v901
        %v903 = vrot.slane %v829, 1
        %v904 = vor.u32 %v826, %v903
        %v905 = vrot.slane %v836, 1
        %v906 = vor.u32 %v833, %v905
        %v907 = vrot.slane %v843, 1
        %v908 = vor.u32 %v840, %v907
        %v909 = vrot.slane %v850, 1
        %v910 = vor.u32 %v847, %v909
        %v911 = vrot.slane %v857, 1
        %v912 = vor.u32 %v854, %v911
        %v913 = vrot.slane %v864, 1
        %v914 = vor.u32 %v861, %v913
        %v915 = vrot.slane %v871, 1
        %v916 = vor.u32 %v868, %v915
        %vm927 = vcmask 1047552
        %vm928 = vsmask.f32 7424
        %vm929 = vmand %vm927, %vm928
        %v930 = vsel %vm929, %v898, 0
        %v931 = vsel %vm929, %v900, 0
        %v932 = vsel %vm929, %v902, 0
        %v933 = vsel %vm929, %v904, 0
        %v934 = vsel %vm929, %v906, 0
        %v935 = vsel %vm929, %v908, 0
        %v936 = vsel %vm929, %v910, 0
        %v937 = vsel %vm929, %v912, 0
        %v938 = vsel %vm929, %v914, 0
        %v939 = vsel %vm929, %v916, 0
        %940 = vrot.lane.b32.xlu0 %v794, 4
        %v941 = vpop.permute.xlu0 %940
        %942 = vrot.lane.b32.xlu0 %v795, 4
        %v943 = vpop.permute.xlu0 %942
        %944 = vrot.lane.b32.xlu0 %v796, 4
        %v945 = vpop.permute.xlu0 %944
        %946 = vrot.lane.b32.xlu0 %v797, 4
        %v947 = vpop.permute.xlu0 %946
        %948 = vrot.lane.b32.xlu0 %v798, 4
        %v949 = vpop.permute.xlu0 %948
        %950 = vrot.lane.b32.xlu0 %v799, 4
        %v951 = vpop.permute.xlu0 %950
        %952 = vrot.lane.b32.xlu0 %v800, 4
        %v953 = vpop.permute.xlu0 %952
        %954 = vrot.lane.b32.xlu0 %v801, 4
        %v955 = vpop.permute.xlu0 %954
        %956 = vrot.lane.b32.xlu0 %v802, 4
        %v957 = vpop.permute.xlu0 %956
        %958 = vrot.lane.b32.xlu0 %v803, 4
        %v959 = vpop.permute.xlu0 %958
        %970 = vrot.lane.b32.xlu0 %v930, 8
        %v971 = vpop.permute.xlu0 %970
        %972 = vrot.lane.b32.xlu0 %v931, 8
        %v973 = vpop.permute.xlu0 %972
        %974 = vrot.lane.b32.xlu0 %v932, 8
        %v975 = vpop.permute.xlu0 %974
        %976 = vrot.lane.b32.xlu0 %v933, 8
        %v977 = vpop.permute.xlu0 %976
        %978 = vrot.lane.b32.xlu0 %v934, 8
        %v979 = vpop.permute.xlu0 %978
        %980 = vrot.lane.b32.xlu0 %v935, 8
        %v981 = vpop.permute.xlu0 %980
        %982 = vrot.lane.b32.xlu0 %v936, 8
        %v983 = vpop.permute.xlu0 %982
        %984 = vrot.lane.b32.xlu0 %v937, 8
        %v985 = vpop.permute.xlu0 %984
        %986 = vrot.lane.b32.xlu0 %v938, 8
        %v987 = vpop.permute.xlu0 %986
        %988 = vrot.lane.b32.xlu0 %v939, 8
        %v989 = vpop.permute.xlu0 %988
        %vm990 = vcmask 31744
        %v993 = vsel %vm990, %v887, %v941
        %v996 = vsel %vm990, %v888, %v943
        %v999 = vsel %vm990, %v889, %v945
        %v1002 = vsel %vm990, %v890, %v947
        %v1005 = vsel %vm990, %v891, %v949
        %v1008 = vsel %vm990, %v892, %v951
        %v1011 = vsel %vm990, %v893, %v953
        %v1014 = vsel %vm990, %v894, %v955
        %v1017 = vsel %vm990, %v895, %v957
        %v1020 = vsel %vm990, %v896, %v959
        %v1022 = vsel %vm532, %v993, %v971
        %v1024 = vsel %vm532, %v996, %v973
        %v1026 = vsel %vm532, %v999, %v975
        %v1028 = vsel %vm532, %v1002, %v977
        %v1030 = vsel %vm532, %v1005, %v979
        %v1032 = vsel %vm532, %v1008, %v981
        %v1034 = vsel %vm532, %v1011, %v983
        %v1036 = vsel %vm532, %v1014, %v985
        %v1038 = vsel %vm532, %v1017, %v987
        %v1040 = vsel %vm532, %v1020, %v989
        %v1041 = vld [vmem:[%s4] sm:$0xf]
        %v1042 = vld [vmem:[%s4 + $0x4] sm:$0x3]
        %s1043 = scalar_lea.vmem %s4, 8
        %v1044 = vld [vmem:[%s1043] sm:$0xf]
        %v1045 = vld [vmem:[%s1043 + $0x4] sm:$0x3]
        %v1048 = vunpack.c.l.b16 %v1044
        %v1049 = vunpack.c.l.b16 %v1045
        %v1050 = vpack.c.b16 %v1049, %v1048
        %vm1051 = vcmask 97280
        %v1052 = vsel %vm1051, %v1024, 0
        %v1054 = vsel %vm1051, %v1026, 0
        %v1056 = vsel %vm1051, %v1028, 0
        %v1058 = vsel %vm1051, %v1030, 0
        %v1060 = vsel %vm1051, %v1032, 0
        %v1062 = vsel %vm1051, %v1034, 0
        %v1064 = vsel %vm1051, %v1036, 0
        %v1066 = vsel %vm1051, %v1038, 0
        %vm1068 = vcmask 1045504
        %v1070 = vsel %vm1068, %v1050, 0
        %1072 = vmatpush.bf16.msra.mxu0 0
        %1073 = vmatpush.bf16.msra.mxu0 0
        %1074 = vmatpush.bf16.msra.mxu0 0
        %1075 = vmatpush.bf16.msra.mxu0 0
        %1076 = vmatpush.bf16.msra.mxu0 0
        %1077 = vmatpush.bf16.msra.mxu0 0
        %1078 = vmatpush.bf16.msra.mxu0 0
        %1079 = vmatpush.bf16.msra.mxu0 %v1070
        %1080 = vmatmul.bf16.gmra.mxu0 %v1052
        %v1081 = vpop.f32.mrf.mxu0
        %v1082 = vadd.f32 0.0, %v1081
        %v1083 = vpop.f32.mrf.mxu0
        %v1084 = vadd.f32 0.0, %v1083
        %1085 = vmatmul.bf16.gmra.mxu0 %v1054
        %v1086 = vpop.f32.mrf.mxu0
        %v1087 = vadd.f32 0.0, %v1086
        %v1088 = vpop.f32.mrf.mxu0
        %v1089 = vadd.f32 0.0, %v1088
        %1090 = vmatmul.bf16.gmra.mxu0 %v1056
        %v1091 = vpop.f32.mrf.mxu0
        %v1092 = vadd.f32 0.0, %v1091
        %v1093 = vpop.f32.mrf.mxu0
        %v1094 = vadd.f32 0.0, %v1093
        %1095 = vmatmul.bf16.gmra.mxu0 %v1058
        %v1096 = vpop.f32.mrf.mxu0
        %v1097 = vadd.f32 0.0, %v1096
        %v1098 = vpop.f32.mrf.mxu0
        %v1099 = vadd.f32 0.0, %v1098
        %1100 = vmatmul.bf16.gmra.mxu0 %v1060
        %v1101 = vpop.f32.mrf.mxu0
        %v1102 = vadd.f32 0.0, %v1101
        %v1103 = vpop.f32.mrf.mxu0
        %v1104 = vadd.f32 0.0, %v1103
        %1105 = vmatmul.bf16.gmra.mxu0 %v1062
        %v1106 = vpop.f32.mrf.mxu0
        %v1107 = vadd.f32 0.0, %v1106
        %v1108 = vpop.f32.mrf.mxu0
        %v1109 = vadd.f32 0.0, %v1108
        %1110 = vmatmul.bf16.gmra.mxu0 %v1064
        %v1111 = vpop.f32.mrf.mxu0
        %v1112 = vadd.f32 0.0, %v1111
        %v1113 = vpop.f32.mrf.mxu0
        %v1114 = vadd.f32 0.0, %v1113
        %1115 = vmatmul.bf16.gmra.mxu0 %v1066
        %v1116 = vpop.f32.mrf.mxu0
        %v1117 = vadd.f32 0.0, %v1116
        %v1118 = vpop.f32.mrf.mxu0
        %v1119 = vadd.f32 0.0, %v1118
        %1120 = vdwg.mxu0
        %v1123 = vunpack.c.l.b16 %v1041
        %v1124 = vunpack.c.l.b16 %v1042
        %v1125 = vpack.c.b16 %v1124, %v1123
        %v1126 = vsel %vm1051, %v1022, 0
        %v1129 = vsel %vm1068, %v1125, 0
        %1131 = vmatpush.bf16.msra.mxu0 0
        %1132 = vmatpush.bf16.msra.mxu0 0
        %1133 = vmatpush.bf16.msra.mxu0 0
        %1134 = vmatpush.bf16.msra.mxu0 0
        %1135 = vmatpush.bf16.msra.mxu0 0
        %1136 = vmatpush.bf16.msra.mxu0 0
        %1137 = vmatpush.bf16.msra.mxu0 0
        %1138 = vmatpush.bf16.msra.mxu0 %v1129
        %1139 = vmatmul.bf16.gmra.mxu0 %v1126
        %v1140 = vpop.f32.mrf.mxu0
        %v1141 = vadd.f32 %v1082, %v1140
        %v1142 = vpop.f32.mrf.mxu0
        %v1143 = vadd.f32 %v1084, %v1142
        %1144 = vmatmul.bf16.gmra.mxu0 %v1052
        %v1145 = vpop.f32.mrf.mxu0
        %v1146 = vadd.f32 %v1087, %v1145
        %v1147 = vpop.f32.mrf.mxu0
        %v1148 = vadd.f32 %v1089, %v1147
        %1149 = vmatmul.bf16.gmra.mxu0 %v1054
        %v1150 = vpop.f32.mrf.mxu0
        %v1151 = vadd.f32 %v1092, %v1150
        %v1152 = vpop.f32.mrf.mxu0
        %v1153 = vadd.f32 %v1094, %v1152
        %1154 = vmatmul.bf16.gmra.mxu0 %v1056
        %v1155 = vpop.f32.mrf.mxu0
        %v1156 = vadd.f32 %v1097, %v1155
        %v1157 = vpop.f32.mrf.mxu0
        %v1158 = vadd.f32 %v1099, %v1157
        %1159 = vmatmul.bf16.gmra.mxu0 %v1058
        %v1160 = vpop.f32.mrf.mxu0
        %v1161 = vadd.f32 %v1102, %v1160
        %v1162 = vpop.f32.mrf.mxu0
        %v1163 = vadd.f32 %v1104, %v1162
        %1164 = vmatmul.bf16.gmra.mxu0 %v1060
        %v1165 = vpop.f32.mrf.mxu0
        %v1166 = vadd.f32 %v1107, %v1165
        %v1167 = vpop.f32.mrf.mxu0
        %v1168 = vadd.f32 %v1109, %v1167
        %1169 = vmatmul.bf16.gmra.mxu0 %v1062
        %v1170 = vpop.f32.mrf.mxu0
        %v1171 = vadd.f32 %v1112, %v1170
        %v1172 = vpop.f32.mrf.mxu0
        %v1173 = vadd.f32 %v1114, %v1172
        %1174 = vmatmul.bf16.gmra.mxu0 %v1064
        %v1175 = vpop.f32.mrf.mxu0
        %v1176 = vadd.f32 %v1117, %v1175
        %v1177 = vpop.f32.mrf.mxu0
        %v1178 = vadd.f32 %v1119, %v1177
        %1179 = vdwg.mxu0
        %s1180 = scalar_lea.vmem %s4, 16
        %v1181 = vld [vmem:[%s1180] sm:$0xf]
        %v1182 = vld [vmem:[%s1180 + $0x4] sm:$0x3]
        %v1185 = vunpack.c.l.b16 %v1181
        %v1186 = vunpack.c.l.b16 %v1182
        %v1187 = vpack.c.b16 %v1186, %v1185
        %v1188 = vsel %vm1051, %v1040, 0
        %v1191 = vsel %vm1068, %v1187, 0
        %1193 = vmatpush.bf16.msra.mxu0 0
        %1194 = vmatpush.bf16.msra.mxu0 0
        %1195 = vmatpush.bf16.msra.mxu0 0
        %1196 = vmatpush.bf16.msra.mxu0 0
        %1197 = vmatpush.bf16.msra.mxu0 0
        %1198 = vmatpush.bf16.msra.mxu0 0
        %1199 = vmatpush.bf16.msra.mxu0 0
        %1200 = vmatpush.bf16.msra.mxu0 %v1191
        %1201 = vmatmul.bf16.gmra.mxu0 %v1054
        %v1202 = vpop.f32.mrf.mxu0
        %v1203 = vadd.f32 0.0, %v1202
        %v1204 = vpop.f32.mrf.mxu0
        %v1205 = vadd.f32 0.0, %v1204
        %1206 = vmatmul.bf16.gmra.mxu0 %v1056
        %v1207 = vpop.f32.mrf.mxu0
        %v1208 = vadd.f32 0.0, %v1207
        %v1209 = vpop.f32.mrf.mxu0
        %v1210 = vadd.f32 0.0, %v1209
        %1211 = vmatmul.bf16.gmra.mxu0 %v1058
        %v1212 = vpop.f32.mrf.mxu0
        %v1213 = vadd.f32 0.0, %v1212
        %v1214 = vpop.f32.mrf.mxu0
        %v1215 = vadd.f32 0.0, %v1214
        %1216 = vmatmul.bf16.gmra.mxu0 %v1060
        %v1217 = vpop.f32.mrf.mxu0
        %v1218 = vadd.f32 0.0, %v1217
        %v1219 = vpop.f32.mrf.mxu0
        %v1220 = vadd.f32 0.0, %v1219
        %1221 = vmatmul.bf16.gmra.mxu0 %v1062
        %v1222 = vpop.f32.mrf.mxu0
        %v1223 = vadd.f32 0.0, %v1222
        %v1224 = vpop.f32.mrf.mxu0
        %v1225 = vadd.f32 0.0, %v1224
        %1226 = vmatmul.bf16.gmra.mxu0 %v1064
        %v1227 = vpop.f32.mrf.mxu0
        %v1228 = vadd.f32 0.0, %v1227
        %v1229 = vpop.f32.mrf.mxu0
        %v1230 = vadd.f32 0.0, %v1229
        %1231 = vmatmul.bf16.gmra.mxu0 %v1066
        %v1232 = vpop.f32.mrf.mxu0
        %v1233 = vadd.f32 0.0, %v1232
        %v1234 = vpop.f32.mrf.mxu0
        %v1235 = vadd.f32 0.0, %v1234
        %1236 = vmatmul.bf16.gmra.mxu0 %v1188
        %v1237 = vpop.f32.mrf.mxu0
        %v1238 = vadd.f32 0.0, %v1237
        %v1239 = vpop.f32.mrf.mxu0
        %v1240 = vadd.f32 0.0, %v1239
        %1241 = vdwg.mxu0
        %v1242 = vadd.f32 %v1141, %v1203
        %v1243 = vadd.f32 %v1143, %v1205
        %v1244 = vadd.f32 %v1146, %v1208
        %v1245 = vadd.f32 %v1148, %v1210
        %v1246 = vadd.f32 %v1151, %v1213
        %v1247 = vadd.f32 %v1153, %v1215
        %v1248 = vadd.f32 %v1156, %v1218
        %v1249 = vadd.f32 %v1158, %v1220
        %v1250 = vadd.f32 %v1161, %v1223
        %v1251 = vadd.f32 %v1163, %v1225
        %v1252 = vadd.f32 %v1166, %v1228
        %v1253 = vadd.f32 %v1168, %v1230
        %v1254 = vadd.f32 %v1171, %v1233
        %v1255 = vadd.f32 %v1173, %v1235
        %v1256 = vadd.f32 %v1176, %v1238
        %v1257 = vadd.f32 %v1178, %v1240
        %v1258 = vld [vmem:[%s5] sm:$0x1]
        %v1260 = vperm.slane %v1258, 0
        %v1262 = vmul.f32 %v1242, %v1260
        %v1263 = vmul.f32 %v1243, %v1260
        %v1264 = vmul.f32 %v1244, %v1260
        %v1265 = vmul.f32 %v1245, %v1260
        %v1266 = vmul.f32 %v1246, %v1260
        %v1267 = vmul.f32 %v1247, %v1260
        %v1268 = vmul.f32 %v1248, %v1260
        %v1269 = vmul.f32 %v1249, %v1260
        %v1270 = vmul.f32 %v1250, %v1260
        %v1271 = vmul.f32 %v1251, %v1260
        %v1272 = vmul.f32 %v1252, %v1260
        %v1273 = vmul.f32 %v1253, %v1260
        %v1274 = vmul.f32 %v1254, %v1260
        %v1275 = vmul.f32 %v1255, %v1260
        %v1276 = vmul.f32 %v1256, %v1260
        %v1277 = vmul.f32 %v1257, %v1260
        %v1278 = vld [vmem:[%s6] sm:$0x1]
        %v1280 = vperm.slane %v1278, 0
        %v1282 = vadd.f32 %v1262, %v1280
        %v1283 = vadd.f32 %v1263, %v1280
        %v1284 = vadd.f32 %v1264, %v1280
        %v1285 = vadd.f32 %v1265, %v1280
        %v1286 = vadd.f32 %v1266, %v1280
        %v1287 = vadd.f32 %v1267, %v1280
        %v1288 = vadd.f32 %v1268, %v1280
        %v1289 = vadd.f32 %v1269, %v1280
        %v1290 = vadd.f32 %v1270, %v1280
        %v1291 = vadd.f32 %v1271, %v1280
        %v1292 = vadd.f32 %v1272, %v1280
        %v1293 = vadd.f32 %v1273, %v1280
        %v1294 = vadd.f32 %v1274, %v1280
        %v1295 = vadd.f32 %v1275, %v1280
        %v1296 = vadd.f32 %v1276, %v1280
        %v1297 = vadd.f32 %v1277, %v1280
        %v1298 = vmax.f32 %v1282, 0.0
        %v1299 = vmax.f32 %v1283, 0.0
        %v1300 = vmax.f32 %v1284, 0.0
        %v1301 = vmax.f32 %v1285, 0.0
        %v1302 = vmax.f32 %v1286, 0.0
        %v1303 = vmax.f32 %v1287, 0.0
        %v1304 = vmax.f32 %v1288, 0.0
        %v1305 = vmax.f32 %v1289, 0.0
        %v1306 = vmax.f32 %v1290, 0.0
        %v1307 = vmax.f32 %v1291, 0.0
        %v1308 = vmax.f32 %v1292, 0.0
        %v1309 = vmax.f32 %v1293, 0.0
        %v1310 = vmax.f32 %v1294, 0.0
        %v1311 = vmax.f32 %v1295, 0.0
        %v1312 = vmax.f32 %v1296, 0.0
        %v1313 = vmax.f32 %v1297, 0.0
        %v1314 = vpack.c.bf16 %v1299, %v1298
        %v1315 = vpack.c.bf16 %v1301, %v1300
        %v1316 = vpack.c.bf16 %v1303, %v1302
        %v1317 = vpack.c.bf16 %v1305, %v1304
        %v1318 = vpack.c.bf16 %v1307, %v1306
        %v1319 = vpack.c.bf16 %v1309, %v1308
        %v1320 = vpack.c.bf16 %v1311, %v1310
        %v1321 = vpack.c.bf16 %v1313, %v1312
        %v1322 = vld [vmem:[%s7] sm:$0x3]
        %v1324 = vsel %vm990, %v1314, 0
        %v1327 = vsel %vm990, %v1315, 0
        %v1330 = vsel %vm990, %v1316, 0
        %v1333 = vsel %vm990, %v1317, 0
        %v1336 = vsel %vm990, %v1318, 0
        %v1339 = vsel %vm990, %v1319, 0
        %v1342 = vsel %vm990, %v1320, 0
        %v1345 = vsel %vm990, %v1321, 0
        %vm1347 = vcmask 1041408
        %v1349 = vsel %vm1347, %v1322, 0
        %1351 = vmatpush.bf16.msra.mxu0 0
        %1352 = vmatpush.bf16.msra.mxu0 0
        %1353 = vmatpush.bf16.msra.mxu0 0
        %1354 = vmatpush.bf16.msra.mxu0 0
        %1355 = vmatpush.bf16.msra.mxu0 0
        %1356 = vmatpush.bf16.msra.mxu0 0
        %1357 = vmatpush.bf16.msra.mxu0 0
        %1358 = vmatpush.bf16.msra.mxu0 %v1349
        %1359 = vmatmul.bf16.gmra.mxu0 %v1324
        %v1360 = vpop.f32.mrf.mxu0
        %v1361 = vadd.f32 0.0, %v1360
        %v1362 = vpop.f32.mrf.mxu0
        %v1363 = vadd.f32 0.0, %v1362
        %1364 = vmatmul.bf16.gmra.mxu0 %v1327
        %v1365 = vpop.f32.mrf.mxu0
        %v1366 = vadd.f32 0.0, %v1365
        %v1367 = vpop.f32.mrf.mxu0
        %v1368 = vadd.f32 0.0, %v1367
        %1369 = vmatmul.bf16.gmra.mxu0 %v1330
        %v1370 = vpop.f32.mrf.mxu0
        %v1371 = vadd.f32 0.0, %v1370
        %v1372 = vpop.f32.mrf.mxu0
        %v1373 = vadd.f32 0.0, %v1372
        %1374 = vmatmul.bf16.gmra.mxu0 %v1333
        %v1375 = vpop.f32.mrf.mxu0
        %v1376 = vadd.f32 0.0, %v1375
        %v1377 = vpop.f32.mrf.mxu0
        %v1378 = vadd.f32 0.0, %v1377
        %1379 = vmatmul.bf16.gmra.mxu0 %v1336
        %v1380 = vpop.f32.mrf.mxu0
        %v1381 = vadd.f32 0.0, %v1380
        %v1382 = vpop.f32.mrf.mxu0
        %v1383 = vadd.f32 0.0, %v1382
        %1384 = vmatmul.bf16.gmra.mxu0 %v1339
        %v1385 = vpop.f32.mrf.mxu0
        %v1386 = vadd.f32 0.0, %v1385
        %v1387 = vpop.f32.mrf.mxu0
        %v1388 = vadd.f32 0.0, %v1387
        %1389 = vmatmul.bf16.gmra.mxu0 %v1342
        %v1390 = vpop.f32.mrf.mxu0
        %v1391 = vadd.f32 0.0, %v1390
        %v1392 = vpop.f32.mrf.mxu0
        %v1393 = vadd.f32 0.0, %v1392
        %1394 = vmatmul.bf16.gmra.mxu0 %v1345
        %v1395 = vpop.f32.mrf.mxu0
        %v1396 = vadd.f32 0.0, %v1395
        %v1397 = vpop.f32.mrf.mxu0
        %v1398 = vadd.f32 0.0, %v1397
        %1399 = vdwg.mxu0
        %v1400 = vld [vmem:[%s8] sm:$0x1]
        %v1402 = vperm.slane %v1400, 0
        %v1404 = vmul.f32 %v1361, %v1402
        %v1405 = vmul.f32 %v1363, %v1402
        %v1406 = vmul.f32 %v1366, %v1402
        %v1407 = vmul.f32 %v1368, %v1402
        %v1408 = vmul.f32 %v1371, %v1402
        %v1409 = vmul.f32 %v1373, %v1402
        %v1410 = vmul.f32 %v1376, %v1402
        %v1411 = vmul.f32 %v1378, %v1402
        %v1412 = vmul.f32 %v1381, %v1402
        %v1413 = vmul.f32 %v1383, %v1402
        %v1414 = vmul.f32 %v1386, %v1402
        %v1415 = vmul.f32 %v1388, %v1402
        %v1416 = vmul.f32 %v1391, %v1402
        %v1417 = vmul.f32 %v1393, %v1402
        %v1418 = vmul.f32 %v1396, %v1402
        %v1419 = vmul.f32 %v1398, %v1402
        %v1420 = vld [vmem:[%s9] sm:$0x1]
        %v1422 = vperm.slane %v1420, 0
        %v1424 = vadd.f32 %v1404, %v1422
        %v1425 = vadd.f32 %v1405, %v1422
        %v1426 = vadd.f32 %v1406, %v1422
        %v1427 = vadd.f32 %v1407, %v1422
        %v1428 = vadd.f32 %v1408, %v1422
        %v1429 = vadd.f32 %v1409, %v1422
        %v1430 = vadd.f32 %v1410, %v1422
        %v1431 = vadd.f32 %v1411, %v1422
        %v1432 = vadd.f32 %v1412, %v1422
        %v1433 = vadd.f32 %v1413, %v1422
        %v1434 = vadd.f32 %v1414, %v1422
        %v1435 = vadd.f32 %v1415, %v1422
        %v1436 = vadd.f32 %v1416, %v1422
        %v1437 = vadd.f32 %v1417, %v1422
        %v1438 = vadd.f32 %v1418, %v1422
        %v1439 = vadd.f32 %v1419, %v1422
        %v1440 = vld [vmem:[%s10] sm:$0xf]
        %v1442 = vsel %vm557, %v1440, 0
        %1444 = vmatpush.bf16.msra.mxu0 0
        %1445 = vmatpush.bf16.msra.mxu0 0
        %1446 = vmatpush.bf16.msra.mxu0 0
        %1447 = vmatpush.bf16.msra.mxu0 0
        %1448 = vmatpush.bf16.msra.mxu0 0
        %1449 = vmatpush.bf16.msra.mxu0 0
        %1450 = vmatpush.bf16.msra.mxu0 0
        %1451 = vmatpush.bf16.msra.mxu0 %v1442
        %1452 = vmatmul.bf16.gmra.mxu0 %v534
        %v1453 = vpop.f32.mrf.mxu0
        %v1454 = vadd.f32 0.0, %v1453
        %v1455 = vpop.f32.mrf.mxu0
        %v1456 = vadd.f32 0.0, %v1455
        %1457 = vmatmul.bf16.gmra.mxu0 %v537
        %v1458 = vpop.f32.mrf.mxu0
        %v1459 = vadd.f32 0.0, %v1458
        %v1460 = vpop.f32.mrf.mxu0
        %v1461 = vadd.f32 0.0, %v1460
        %1462 = vmatmul.bf16.gmra.mxu0 %v540
        %v1463 = vpop.f32.mrf.mxu0
        %v1464 = vadd.f32 0.0, %v1463
        %v1465 = vpop.f32.mrf.mxu0
        %v1466 = vadd.f32 0.0, %v1465
        %1467 = vmatmul.bf16.gmra.mxu0 %v543
        %v1468 = vpop.f32.mrf.mxu0
        %v1469 = vadd.f32 0.0, %v1468
        %v1470 = vpop.f32.mrf.mxu0
        %v1471 = vadd.f32 0.0, %v1470
        %1472 = vmatmul.bf16.gmra.mxu0 %v546
        %v1473 = vpop.f32.mrf.mxu0
        %v1474 = vadd.f32 0.0, %v1473
        %v1475 = vpop.f32.mrf.mxu0
        %v1476 = vadd.f32 0.0, %v1475
        %1477 = vmatmul.bf16.gmra.mxu0 %v549
        %v1478 = vpop.f32.mrf.mxu0
        %v1479 = vadd.f32 0.0, %v1478
        %v1480 = vpop.f32.mrf.mxu0
        %v1481 = vadd.f32 0.0, %v1480
        %1482 = vmatmul.bf16.gmra.mxu0 %v552
        %v1483 = vpop.f32.mrf.mxu0
        %v1484 = vadd.f32 0.0, %v1483
        %v1485 = vpop.f32.mrf.mxu0
        %v1486 = vadd.f32 0.0, %v1485
        %1487 = vmatmul.bf16.gmra.mxu0 %v555
        %v1488 = vpop.f32.mrf.mxu0
        %v1489 = vadd.f32 0.0, %v1488
        %v1490 = vpop.f32.mrf.mxu0
        %v1491 = vadd.f32 0.0, %v1490
        %1492 = vdwg.mxu0
        %v1493 = vld [vmem:[%s11] sm:$0x1]
        %v1495 = vperm.slane %v1493, 0
        %v1497 = vmul.f32 %v1454, %v1495
        %v1498 = vmul.f32 %v1456, %v1495
        %v1499 = vmul.f32 %v1459, %v1495
        %v1500 = vmul.f32 %v1461, %v1495
        %v1501 = vmul.f32 %v1464, %v1495
        %v1502 = vmul.f32 %v1466, %v1495
        %v1503 = vmul.f32 %v1469, %v1495
        %v1504 = vmul.f32 %v1471, %v1495
        %v1505 = vmul.f32 %v1474, %v1495
        %v1506 = vmul.f32 %v1476, %v1495
        %v1507 = vmul.f32 %v1479, %v1495
        %v1508 = vmul.f32 %v1481, %v1495
        %v1509 = vmul.f32 %v1484, %v1495
        %v1510 = vmul.f32 %v1486, %v1495
        %v1511 = vmul.f32 %v1489, %v1495
        %v1512 = vmul.f32 %v1491, %v1495
        %v1513 = vld [vmem:[%s12] sm:$0x1]
        %v1515 = vperm.slane %v1513, 0
        %v1517 = vadd.f32 %v1497, %v1515
        %v1518 = vadd.f32 %v1498, %v1515
        %v1519 = vadd.f32 %v1499, %v1515
        %v1520 = vadd.f32 %v1500, %v1515
        %v1521 = vadd.f32 %v1501, %v1515
        %v1522 = vadd.f32 %v1502, %v1515
        %v1523 = vadd.f32 %v1503, %v1515
        %v1524 = vadd.f32 %v1504, %v1515
        %v1525 = vadd.f32 %v1505, %v1515
        %v1526 = vadd.f32 %v1506, %v1515
        %v1527 = vadd.f32 %v1507, %v1515
        %v1528 = vadd.f32 %v1508, %v1515
        %v1529 = vadd.f32 %v1509, %v1515
        %v1530 = vadd.f32 %v1510, %v1515
        %v1531 = vadd.f32 %v1511, %v1515
        %v1532 = vadd.f32 %v1512, %v1515
        %v1533 = vadd.f32 %v1424, %v1517
        %v1534 = vadd.f32 %v1425, %v1518
        %v1535 = vadd.f32 %v1426, %v1519
        %v1536 = vadd.f32 %v1427, %v1520
        %v1537 = vadd.f32 %v1428, %v1521
        %v1538 = vadd.f32 %v1429, %v1522
        %v1539 = vadd.f32 %v1430, %v1523
        %v1540 = vadd.f32 %v1431, %v1524
        %v1541 = vadd.f32 %v1432, %v1525
        %v1542 = vadd.f32 %v1433, %v1526
        %v1543 = vadd.f32 %v1434, %v1527
        %v1544 = vadd.f32 %v1435, %v1528
        %v1545 = vadd.f32 %v1436, %v1529
        %v1546 = vadd.f32 %v1437, %v1530
        %v1547 = vadd.f32 %v1438, %v1531
        %v1548 = vadd.f32 %v1439, %v1532
        %v1549 = vmax.f32 %v1533, 0.0
        %v1550 = vmax.f32 %v1534, 0.0
        %v1551 = vmax.f32 %v1535, 0.0
        %v1552 = vmax.f32 %v1536, 0.0
        %v1553 = vmax.f32 %v1537, 0.0
        %v1554 = vmax.f32 %v1538, 0.0
        %v1555 = vmax.f32 %v1539, 0.0
        %v1556 = vmax.f32 %v1540, 0.0
        %v1557 = vmax.f32 %v1541, 0.0
        %v1558 = vmax.f32 %v1542, 0.0
        %v1559 = vmax.f32 %v1543, 0.0
        %v1560 = vmax.f32 %v1544, 0.0
        %v1561 = vmax.f32 %v1545, 0.0
        %v1562 = vmax.f32 %v1546, 0.0
        %v1563 = vmax.f32 %v1547, 0.0
        %v1564 = vmax.f32 %v1548, 0.0
        %vm1565 = vcmask 130048
        %1566 = vst.msk [vmem:[%s447] sm:$0xff] %vm1565, %v1549
        %1567 = vst.msk [vmem:[%s447 + $0x8] sm:$0xff] %vm1565, %v1550
        %1568 = vst.msk [vmem:[%s447 + $0x10] sm:$0xff] %vm1565, %v1551
        %1569 = vst.msk [vmem:[%s447 + $0x18] sm:$0xff] %vm1565, %v1552
        %1570 = vst.msk [vmem:[%s447 + $0x20] sm:$0xff] %vm1565, %v1553
        %1571 = vst.msk [vmem:[%s447 + $0x28] sm:$0xff] %vm1565, %v1554
        %1572 = vst.msk [vmem:[%s447 + $0x30] sm:$0xff] %vm1565, %v1555
        %1573 = vst.msk [vmem:[%s447 + $0x38] sm:$0xff] %vm1565, %v1556
        %1574 = vst.msk [vmem:[%s447 + $0x40] sm:$0xff] %vm1565, %v1557
        %1575 = vst.msk [vmem:[%s447 + $0x48] sm:$0xff] %vm1565, %v1558
        %1576 = vst.msk [vmem:[%s447 + $0x50] sm:$0xff] %vm1565, %v1559
        %1577 = vst.msk [vmem:[%s447 + $0x58] sm:$0xff] %vm1565, %v1560
        %1578 = vst.msk [vmem:[%s447 + $0x60] sm:$0xff] %vm1565, %v1561
        %1579 = vst.msk [vmem:[%s447 + $0x68] sm:$0xff] %vm1565, %v1562
        %1580 = vst.msk [vmem:[%s447 + $0x70] sm:$0xff] %vm1565, %v1563
        %1581 = vst.msk [vmem:[%s447 + $0x78] sm:$0xff] %vm1565, %v1564
        %s1582 = sand.u32 %s327, 1
        %s1583 = scalar_lea.sflag [#allocation3], %s1582
        %s1584 = sand.u32 %s327, 1
        %s1585 = smul.addr %s1584, 128
        %s1586 = scalar_lea.vmem [#allocation2], %s1585
        // Predicated region
        $region73: #{tpu_custom_call.1} parent=71 // pred_check
          %p1587 = pneg %p337
        $region74: #{tpu_custom_call.1} parent=71 // pred_check_branch
          %1589 = sbr.rel (%p1587) target = $region76
        $region75: #{tpu_custom_call.1} parent=71 // pred_region
          %s1590 = smul.u32 8, %s32
          %1592 = vsyncadd %s1583, 0
          %s1593 = smul.addr %s1590, 2
          %s1594 = smul.addr %s31, 32
          %s1595 = sadd.s32 %s1593, %s1594
          %s1596 = smul.addr %s1595, 8
          %s1597 = scalar_lea.hbm %s13, %s1596
          %s1598 = sshll.u32 %s1586, 4
          %s1599 = int_to_ptr.vmem [resolvable:$true] %s1598
          %s1600 = sshll.u32 %s1597, 4
          %s1601 = int_to_ptr.hbm [resolvable:$true] %s1600
          %1606 = dma.vmem_to_hbm [thread:$0]  %s1599, 2048, %s1601, %s1583, 128, 128, 8
        $region76: #{tpu_custom_call.1} parent=71 // pred_fallthru
          _
      $region72: #{tpu_custom_call.1} parent=5 // pred_fallthru
        _
      %p1607 = scmp.le.s32.totalorder 2, %s22
      // Predicated region
      $region77: #{tpu_custom_call.1} parent=5 // pred_check
        %p1608 = pneg %p1607
      $region78: #{tpu_custom_call.1} parent=5 // pred_check_branch
        %1610 = sbr.rel (%p1608) target = $region80
      $region79: #{tpu_custom_call.1} parent=5 // pred_region
        %s1611 = ssub.s32 %s22, 2
        // Predicated region
        $region81: #{tpu_custom_call.1} parent=79 // pred_check
          %p1612 = pneg %p343
        $region82: #{tpu_custom_call.1} parent=79 // pred_check_branch
          %1614 = sbr.rel (%p1612) target = $region84
        $region83: #{tpu_custom_call.1} parent=79 // pred_region
          %s1615 = sand.u32 %s328, 1
          %s1616 = scalar_lea.sflag [#allocation3], %s1615
          %s1617 = sand.u32 %s328, 1
          %s1618 = smul.addr %s1617, 128
          %s1619 = scalar_lea.vmem [#allocation2], %s1618
          %1621 = dma.done %s1616, 2048
        $region84: #{tpu_custom_call.1} parent=79 // pred_fallthru
          _
      $region80: #{tpu_custom_call.1} parent=5 // pred_fallthru
        _
    $region6: #{tpu_custom_call.1} parent=1 // loop_footer
      %s26 = sadd.s32 1, %s22
    $region7: #{tpu_custom_call.1} parent=1 // loop_footer_branch
      %21 = sbr.rel target = $region3
    $region8: #{tpu_custom_call.1} parent=1 // loop_exit
      _
    %1622 = vsyncpa [#allocation3], 1
    %s1623 = scalar_lea.sflag [#allocation3], 1
    %1624 = vsyncpa %s1623, 1

</llo_original>
